<compile_context>
chip_gen: v6e
topology: v6e:2x2x1
jax: 0.10.0
libtpu: 0.0.40
codegen_flags: <defaults>
</compile_context>

<pallas_src>
import numpy as np
import jax
import jax.numpy as jnp
from jax import lax
from jax.experimental import pallas as pl
from jax.experimental.pallas import tpu as pltpu

TAG_TO_IX = {'B': 0, 'I': 1, 'O': 2, '<START>': 3, '<STOP>': 4}
NUM_TAGS = 5
START_IDX = TAG_TO_IX['<START>']
STOP_IDX = TAG_TO_IX['<STOP>']
P = 8          # padded tag count (sublane-friendly)
NEG = -1e9


# ----------------------------------------------------------------------------
# Fused kernel: embedding(+folded W_in) -> interleaved BiLSTM -> hidden2tag
#               -> Viterbi DP -> backtracking.   No scratch, no grid.
# ----------------------------------------------------------------------------
def _bilstm_crf_kernel(sent_ref, embw_ref, bin_ref, whh_ref,
                       h0_ref, c0_ref, w2t_ref, b2t_ref, trans_ref, trans_t_ref,
                       score_ref, path_ref, feats_ref):
    T = feats_ref.shape[0]
    V = embw_ref.shape[0]
    H2 = h0_ref.shape[1]                 # 2H (combined [h_fwd | h_bwd])
    H = H2 // 2
    G = embw_ref.shape[1]                # 8H = 4 gate groups x 2 directions (lane-dense)
    Pp = trans_ref.shape[0]              # padded tag count

    # ---- 1) embedding lookup (+folded input projection) as one one-hot matmul ----
    # NOTE: token ids >= vocab_size would silently select a zero embedding row
    # (padded rows); the host wrapper asserts validity.
    sent = sent_ref[...]                                         # (T,1) int32
    one_hot = (lax.broadcasted_iota(jnp.int32, (T, V), 1) == sent).astype(jnp.float32)
    pre_all = (jnp.dot(one_hot, embw_ref[...], preferred_element_type=jnp.float32)
               + bin_ref[...])                                   # (T, 8H) — one f32 vreg

    # ---- 2) hoist fwd/bwd pre selection out of the recurrence ---------------------
    # All T combined rows are loop-invariant register values (static slices); nothing
    # here depends on the h/c carry, so it is off the recurrence critical path.
    lane_g = lax.broadcasted_iota(jnp.int32, (1, G), 1)
    fwd_lane = (lane_g % H2) < H
    pre_steps = [jnp.where(fwd_lane, pre_all[t:t + 1, :], pre_all[T - 1 - t:T - t, :])
                 for t in range(T)]

    # ---- 3) interleaved fwd+bwd LSTM recurrence (block-diagonal Whh) --------------
    # Gate groups are [i | f | o | g]: one sigmoid over 96 lanes + one tanh over 32.
    whh = whh_ref[...]                                           # (2H, 8H)
    h = h0_ref[...]                                              # (1,2H) = [h_f | h_b]
    c = c0_ref[...]
    h_steps = []
    for t in range(T):                                           # fully unrolled (T=8)
        gates = pre_steps[t] + jnp.dot(h, whh, preferred_element_type=jnp.float32)
        sig = jax.nn.sigmoid(gates[:, :3 * H2])                  # i, f, o (both dirs)
        i_g = sig[:, 0 * H2:1 * H2]
        f_g = sig[:, 1 * H2:2 * H2]
        o_g = sig[:, 2 * H2:3 * H2]
        g_g = jnp.tanh(gates[:, 3 * H2:])                        # g    (both dirs)
        c = f_g * c + i_g * g_g
        h = o_g * jnp.tanh(c)
        h_steps.append(h)       # lanes [0,H): fwd hidden @ t ; lanes [H,2H): bwd hidden @ T-1-t

    # ---- 4) hidden2tag (register-resident hcat, single output store) --------------
    lane_h = lax.broadcasted_iota(jnp.int32, (1, H2), 1) < H
    hcat = jnp.concatenate(
        [jnp.where(lane_h, h_steps[t], h_steps[T - 1 - t]) for t in range(T)], axis=0)  # (T,2H)
    feats = (jnp.dot(hcat, w2t_ref[...], preferred_element_type=jnp.float32)
             + b2t_ref[...])                                     # (T,P) register value
    feats_ref[...] = feats                                       # single store, never re-read

    # ---- 5) Viterbi DP with alternating row/col orientation -----------------------
    trans = trans_ref[...]                                       # (P,P)  [next, prev]
    trans_t = trans_t_ref[...]                                   # (P,P)  [prev, next]
    lane_if = lax.broadcasted_iota(jnp.int32, (1, Pp), 1).astype(jnp.float32)    # (1,P)
    sub_if = lax.broadcasted_iota(jnp.int32, (Pp, 1), 0).astype(jnp.float32)     # (P,1)
    prev_lane = lax.broadcasted_iota(jnp.int32, (Pp, Pp), 1).astype(jnp.float32)  # prev = lane
    prev_sub = lax.broadcasted_iota(jnp.int32, (Pp, Pp), 0).astype(jnp.float32)   # prev = sublane
    eye = (lax.broadcasted_iota(jnp.int32, (Pp, Pp), 0)
           == lax.broadcasted_iota(jnp.int32, (Pp, Pp), 1)).astype(jnp.float32)
    tpos_f = lax.broadcasted_iota(jnp.int32, (1, T), 1).astype(jnp.float32)

    # init_vvars: -10000 everywhere, 0 at START, NEG for padded tags (row form)
    fv = jnp.where(lane_if == float(START_IDX), 0.0,
                   jnp.where(lane_if < float(NUM_TAGS), -10000.0, NEG)).astype(jnp.float32)

    # emissions in both orientations; loop-invariant w.r.t. fv => off the DP chain
    feat_rows = [feats[t:t + 1, :] for t in range(T)]
    feat_cols = {t: jnp.sum(feat_rows[t] * eye, axis=1, keepdims=True)
                 for t in range(0, T, 2)}

    bptrs = []                                                   # register-resident backpointers
    for t in range(T):                                           # fully unrolled
        if t % 2 == 0:
            # fv is a row (1,P) indexed by prev:  M[next,prev] = trans + fv
            M = trans + fv
            vit = jnp.max(M, axis=1, keepdims=True)              # (P,1) per next tag
            bptr = jnp.min(jnp.where(M >= vit, prev_lane, float(Pp)),
                           axis=1, keepdims=True)                # (P,1) first argmax (prev)
            fv = vit + feat_cols[t]                              # -> column form
        else:
            # fv is a column (P,1) indexed by prev: M[prev,next] = trans^T + fv
            M = trans_t + fv
            vit = jnp.max(M, axis=0, keepdims=True)              # (1,P) per next tag
            bptr = jnp.min(jnp.where(M >= vit, prev_sub, float(Pp)),
                           axis=0, keepdims=True)                # (1,P) first argmax (prev)
            fv = vit + feat_rows[t]                              # -> row form
        bptrs.append(bptr)

    if T % 2 == 0:                                               # fv ends as a row
        terminal = fv + trans[STOP_IDX:STOP_IDX + 1, :]
        maxv = jnp.max(terminal, axis=1, keepdims=True)          # (1,1)
        best = jnp.min(jnp.where(terminal >= maxv, lane_if, float(Pp)),
                       axis=1, keepdims=True)                    # (1,1)
    else:                                                        # fv ends as a column
        terminal = fv + trans_t[:, STOP_IDX:STOP_IDX + 1]
        maxv = jnp.max(terminal, axis=0, keepdims=True)
        best = jnp.min(jnp.where(terminal >= maxv, sub_if, float(Pp)),
                       axis=0, keepdims=True)
    score_ref[...] = maxv

    # ---- 6) backtracking over register-resident backpointers ----------------------
    path_row = jnp.where(tpos_f == float(T - 1), best, 0.0)
    cur = best
    for i in range(T - 1):                                       # fully unrolled
        t = T - 1 - i
        bptr = bptrs[t]
        if t % 2 == 0:   # column (P,1) indexed by next tag
            sel = jnp.sum(jnp.where(sub_if == cur, bptr, 0.0), axis=0, keepdims=True)
        else:            # row (1,P) indexed by next tag
            sel = jnp.sum(jnp.where(lane_if == cur, bptr, 0.0), axis=1, keepdims=True)
        path_row = jnp.where(tpos_f == float(t - 1), sel, path_row)
        cur = sel
    # (torch also asserts bptrs[0][path[0]] == START; verified host-side vs reference)
    path_ref[...] = path_row.astype(jnp.int32)


# ----------------------------------------------------------------------------
# Parameter packing (done once, outside the hot path):
#   gate-grouped combined layout: columns [i_f i_b | f_f f_b | o_f o_b | g_f g_b]
#   (3 sigmoid gates contiguous in lanes [0,6H), tanh gate in [6H,8H))
#   input projection folded into the embedding table (exact f32 in numpy).
# ----------------------------------------------------------------------------
def pack_kernel_params(p):
    f32 = lambda a: np.asarray(a, np.float32)
    E = f32(p['wih_f']).shape[0]
    H = f32(p['whh_f']).shape[0]
    H2, G = 2 * H, 8 * H

    w_in = np.zeros((E, G), np.float32)
    b_in = np.zeros((1, G), np.float32)
    whh = np.zeros((H2, G), np.float32)        # block-diagonal over directions
    # source (torch) gate order is [i, f, g, o]; destination groups are [i, f, o, g]
    for dst, g in enumerate((0, 1, 3, 2)):
        w_in[:, dst * H2:dst * H2 + H] = f32(p['wih_f'])[:, g * H:(g + 1) * H]
        w_in[:, dst * H2 + H:(dst + 1) * H2] = f32(p['wih_b'])[:, g * H:(g + 1) * H]
        b_in[:, dst * H2:dst * H2 + H] = f32(p['b_f'])[:, g * H:(g + 1) * H]
        b_in[:, dst * H2 + H:(dst + 1) * H2] = f32(p['b_b'])[:, g * H:(g + 1) * H]
        whh[0:H, dst * H2:dst * H2 + H] = f32(p['whh_f'])[:, g * H:(g + 1) * H]
        whh[H:H2, dst * H2 + H:(dst + 1) * H2] = f32(p['whh_b'])[:, g * H:(g + 1) * H]

    embed_w = f32(p['embed']) @ w_in           # (V_pad, 8H): fold W_in into the table
    trans = f32(p['trans_p'])

    return dict(
        embed_w=jnp.asarray(embed_w),
        b_in=jnp.asarray(b_in),
        whh=jnp.asarray(whh),
        h0=jnp.concatenate([jnp.asarray(p['h0f'], jnp.float32),
                            jnp.asarray(p['h0b'], jnp.float32)], axis=1),
        c0=jnp.concatenate([jnp.asarray(p['c0f'], jnp.float32),
                            jnp.asarray(p['c0b'], jnp.float32)], axis=1),
        w2t=jnp.asarray(p['w2t'], jnp.float32),
        b2t=jnp.asarray(p['b2t'], jnp.float32),
        trans=jnp.asarray(trans),
        trans_t=jnp.asarray(trans.T.copy()),
    )


# ----------------------------------------------------------------------------
# Wrapper: one fused pallas_call, no grid, whole arrays resident in VMEM
# ----------------------------------------------------------------------------
@jax.jit
def bilstm_crf_forward(sentence, kp):
    T = sentence.shape[0]
    Pp = kp['trans'].shape[0]
    sent_col = sentence.astype(jnp.int32).reshape(T, 1)

    vmem = pl.BlockSpec(memory_space=pltpu.MemorySpace.VMEM)
    score, path, feats = pl.pallas_call(
        _bilstm_crf_kernel,
        out_shape=(jax.ShapeDtypeStruct((1, 1), jnp.float32),     # path score
                   jax.ShapeDtypeStruct((1, T), jnp.int32),       # best tag sequence
                   jax.ShapeDtypeStruct((T, Pp), jnp.float32)),   # lstm_feats (diag only)
        in_specs=[vmem] * 10,
        out_specs=(vmem, vmem, vmem),
    )(sent_col, kp['embed_w'], kp['b_in'], kp['whh'], kp['h0'], kp['c0'],
      kp['w2t'], kp['b2t'], kp['trans'], kp['trans_t'])

    return score[0, 0], path[0], feats


# ----------------------------------------------------------------------------
# Pure-numpy reference (torch-equivalent semantics, unpadded tags)
# ----------------------------------------------------------------------------
def reference_forward(sentence, p):
    f32 = lambda a: np.asarray(a, np.float32)
    emb = f32(p['embed'])[np.asarray(sentence)]
    T = emb.shape[0]
    H = p['whh_f'].shape[0]
    sigmoid = lambda x: 1.0 / (1.0 + np.exp(-x))

    def run_dir(wih, whh, b, h, c, order):
        hs = np.zeros((T, H), np.float32)
        pre = emb @ f32(wih) + f32(b)
        for t in order:
            g = pre[t:t + 1] + h @ f32(whh)
            i_g, f_g = sigmoid(g[:, :H]), sigmoid(g[:, H:2 * H])
            g_g, o_g = np.tanh(g[:, 2 * H:3 * H]), sigmoid(g[:, 3 * H:4 * H])
            c = f_g * c + i_g * g_g
            h = o_g * np.tanh(c)
            hs[t] = h[0]
        return hs

    hf = run_dir(p['wih_f'], p['whh_f'], p['b_f'], f32(p['h0f']), f32(p['c0f']), range(T))
    hb = run_dir(p['wih_b'], p['whh_b'], p['b_b'], f32(p['h0b']), f32(p['c0b']), range(T - 1, -1, -1))
    hcat = np.concatenate([hf, hb], axis=1)
    feats = hcat @ f32(p['w2t'])[:, :NUM_TAGS] + f32(p['b2t'])[:, :NUM_TAGS]

    trans = f32(p['trans_p'])[:NUM_TAGS, :NUM_TAGS]
    fv = np.full((NUM_TAGS,), -10000.0, np.float32)
    fv[START_IDX] = 0.0
    bptrs = []
    for t in range(T):
        M = trans + fv[None, :]
        bp = np.argmax(M, axis=1)
        fv = M[np.arange(NUM_TAGS), bp] + feats[t]
        bptrs.append(bp)
    terminal = fv + trans[STOP_IDX]
    best = int(np.argmax(terminal))
    score = float(terminal[best])
    path = [best]
    for bp in reversed(bptrs):
        best = int(bp[best])
        path.append(best)
    assert path.pop() == START_IDX
    path.reverse()
    return score, np.asarray(path, np.int32), feats


# ----------------------------------------------------------------------------
if __name__ == "__main__":
    vocab_size, embedding_dim, hidden_dim, seq_len = 20, 32, 32, 8
    H = hidden_dim // 2
    vocab_pad = ((vocab_size + 7) // 8) * 8     # pad embed sublanes; one-hot never hits pads

    key = jax.random.PRNGKey(0)
    ks = jax.random.split(key, 16)
    s = np.float32(1.0 / np.sqrt(H))
    u = lambda k, shp, sc: (jax.random.uniform(k, shp, jnp.float32, -1.0, 1.0) * sc)

    embed_raw = jax.random.normal(ks[0], (vocab_size, embedding_dim), jnp.float32)
    embed = jnp.zeros((vocab_pad, embedding_dim), jnp.float32).at[:vocab_size].set(embed_raw)

    params = dict(
        embed=embed,
        wih_f=u(ks[1], (embedding_dim, 4 * H), s),
        whh_f=u(ks[2], (H, 4 * H), s),
        b_f=u(ks[3], (1, 4 * H), s),            # b_ih + b_hh combined
        wih_b=u(ks[4], (embedding_dim, 4 * H), s),
        whh_b=u(ks[5], (H, 4 * H), s),
        b_b=u(ks[6], (1, 4 * H), s),
        h0f=jax.random.normal(ks[7], (1, H), jnp.float32),
        c0f=jax.random.normal(ks[8], (1, H), jnp.float32),
        h0b=jax.random.normal(ks[9], (1, H), jnp.float32),
        c0b=jax.random.normal(ks[10], (1, H), jnp.float32),
    )
    w2t5 = u(ks[11], (hidden_dim, NUM_TAGS), np.float32(1.0 / np.sqrt(hidden_dim)))
    b2t5 = u(ks[12], (1, NUM_TAGS), np.float32(1.0 / np.sqrt(hidden_dim)))
    trans5 = jax.random.normal(ks[13], (NUM_TAGS, NUM_TAGS), jnp.float32)
    trans5 = trans5.at[START_IDX, :].set(-10000.0).at[:, STOP_IDX].set(-10000.0)

    params['w2t'] = jnp.zeros((hidden_dim, P), jnp.float32).at[:, :NUM_TAGS].set(w2t5)
    params['b2t'] = jnp.zeros((1, P), jnp.float32).at[:, :NUM_TAGS].set(b2t5)
    params['trans_p'] = jnp.full((P, P), NEG, jnp.float32).at[:NUM_TAGS, :NUM_TAGS].set(trans5)

    kernel_params = pack_kernel_params(params)

    sentence = jax.random.randint(ks[14], (seq_len,), 0, vocab_size, dtype=jnp.int32)
    assert int(jnp.max(sentence)) < vocab_size   # guard: padded embed rows are zero

    score, path, feats = bilstm_crf_forward(sentence, kernel_params)
    score = jax.block_until_ready(score)
    path = jax.block_until_ready(path)
    feats = jax.block_until_ready(feats)

    ref_score, ref_path, ref_feats = reference_forward(np.asarray(sentence), params)

    np.testing.assert_allclose(np.asarray(feats)[:, :NUM_TAGS], ref_feats, rtol=2e-3, atol=2e-3)
    np.testing.assert_allclose(float(score), ref_score, rtol=1e-3, atol=1e-2)
    assert np.array_equal(np.asarray(path), ref_path), (np.asarray(path), ref_path)

    print("KERNEL_OK")
</pallas_src>

<mosaic_0001>
module attributes {stable_mosaic.version = 11 : i64} {
  func.func @_bilstm_crf_kernel(%arg0: memref<8x1xi32, #tpu.memory_space<vmem>>, %arg1: memref<24x128xf32, #tpu.memory_space<vmem>>, %arg2: memref<1x128xf32, #tpu.memory_space<vmem>>, %arg3: memref<32x128xf32, #tpu.memory_space<vmem>>, %arg4: memref<1x32xf32, #tpu.memory_space<vmem>>, %arg5: memref<1x32xf32, #tpu.memory_space<vmem>>, %arg6: memref<32x8xf32, #tpu.memory_space<vmem>>, %arg7: memref<1x8xf32, #tpu.memory_space<vmem>>, %arg8: memref<8x8xf32, #tpu.memory_space<vmem>>, %arg9: memref<8x8xf32, #tpu.memory_space<vmem>>, %arg10: memref<1x1xf32, #tpu.memory_space<vmem>>, %arg11: memref<1x8xi32, #tpu.memory_space<vmem>>, %arg12: memref<8x8xf32, #tpu.memory_space<vmem>>) attributes {dimension_semantics = [], scalar_prefetch = 0 : i64, scratch_operands = 0 : i64, tpu.core_type = #tpu.core_type<tc>} {
    %c0 = arith.constant 0 : index
    %c0_0 = arith.constant 0 : index
    %0 = vector.load %arg0[%c0, %c0_0] : memref<8x1xi32, #tpu.memory_space<vmem>>, vector<8x1xi32>
    %1 = tpu.iota {dimensions = array<i32: 1>} : vector<8x24xi32>
    %2 = vector.broadcast %0 : vector<8x1xi32> to vector<8x24xi32>
    %3 = arith.cmpi eq, %1, %2 : vector<8x24xi32>
    %4 = arith.extui %3 : vector<8x24xi1> to vector<8x24xi32>
    %5 = arith.sitofp %4 : vector<8x24xi32> to vector<8x24xf32>
    %c0_1 = arith.constant 0 : index
    %c0_2 = arith.constant 0 : index
    %6 = vector.load %arg1[%c0_1, %c0_2] : memref<24x128xf32, #tpu.memory_space<vmem>>, vector<24x128xf32>
    %cst = arith.constant dense<0.000000e+00> : vector<8x128xf32>
    %7 = tpu.matmul %5, %6, %cst {dimension_numbers = #tpu.dot_dimension_numbers<[1], [0], [0], [1], [0, 0, 1, 1], [], []>} : vector<8x24xf32>, vector<24x128xf32>, vector<8x128xf32> -> vector<8x128xf32>
    %c0_3 = arith.constant 0 : index
    %c0_4 = arith.constant 0 : index
    %8 = vector.load %arg2[%c0_3, %c0_4] : memref<1x128xf32, #tpu.memory_space<vmem>>, vector<1x128xf32>
    %9 = vector.broadcast %8 : vector<1x128xf32> to vector<8x128xf32>
    %10 = arith.addf %7, %9 : vector<8x128xf32>
    %11 = tpu.iota {dimensions = array<i32: 1>} : vector<1x128xi32>
    %c32_i32 = arith.constant 32 : i32
    %c0_i32 = arith.constant 0 : i32
    %12 = arith.cmpi eq, %c32_i32, %c0_i32 : i32
    %c1_i32 = arith.constant 1 : i32
    %13 = arith.select %12, %c1_i32, %c32_i32 : i32
    %14 = vector.broadcast %13 : i32 to vector<1x128xi32>
    %15 = arith.remsi %11, %14 : vector<1x128xi32>
    %c0_i32_5 = arith.constant 0 : i32
    %16 = vector.broadcast %c0_i32_5 : i32 to vector<1x128xi32>
    %17 = arith.cmpi ne, %15, %16 : vector<1x128xi32>
    %c0_i32_6 = arith.constant 0 : i32
    %18 = vector.broadcast %c0_i32_6 : i32 to vector<1x128xi32>
    %19 = arith.cmpi slt, %15, %18 : vector<1x128xi32>
    %c0_i32_7 = arith.constant 0 : i32
    %20 = arith.cmpi slt, %13, %c0_i32_7 : i32
    %21 = vector.broadcast %20 : i1 to vector<1x128xi1>
    %22 = vector.broadcast %21 : vector<1x128xi1> to vector<1x128xi1>
    %23 = arith.xori %19, %22 : vector<1x128xi1>
    %24 = arith.andi %23, %17 : vector<1x128xi1>
    %25 = vector.broadcast %13 : i32 to vector<1x128xi32>
    %26 = arith.addi %15, %25 : vector<1x128xi32>
    %27 = arith.select %24, %26, %15 : vector<1x128xi1>, vector<1x128xi32>
    %c16_i32 = arith.constant 16 : i32
    %28 = vector.broadcast %c16_i32 : i32 to vector<1x128xi32>
    %29 = arith.cmpi slt, %27, %28 : vector<1x128xi32>
    %30 = vector.extract_strided_slice %10 {offsets = [0, 0], sizes = [1, 128], strides = [1, 1]} : vector<8x128xf32> to vector<1x128xf32>
    %31 = vector.extract_strided_slice %10 {offsets = [7, 0], sizes = [1, 128], strides = [1, 1]} : vector<8x128xf32> to vector<1x128xf32>
    %32 = arith.select %29, %30, %31 : vector<1x128xi1>, vector<1x128xf32>
    %33 = vector.extract_strided_slice %10 {offsets = [1, 0], sizes = [1, 128], strides = [1, 1]} : vector<8x128xf32> to vector<1x128xf32>
    %34 = vector.extract_strided_slice %10 {offsets = [6, 0], sizes = [1, 128], strides = [1, 1]} : vector<8x128xf32> to vector<1x128xf32>
    %35 = arith.select %29, %33, %34 : vector<1x128xi1>, vector<1x128xf32>
    %36 = vector.extract_strided_slice %10 {offsets = [2, 0], sizes = [1, 128], strides = [1, 1]} : vector<8x128xf32> to vector<1x128xf32>
    %37 = vector.extract_strided_slice %10 {offsets = [5, 0], sizes = [1, 128], strides = [1, 1]} : vector<8x128xf32> to vector<1x128xf32>
    %38 = arith.select %29, %36, %37 : vector<1x128xi1>, vector<1x128xf32>
    %39 = vector.extract_strided_slice %10 {offsets = [3, 0], sizes = [1, 128], strides = [1, 1]} : vector<8x128xf32> to vector<1x128xf32>
    %40 = vector.extract_strided_slice %10 {offsets = [4, 0], sizes = [1, 128], strides = [1, 1]} : vector<8x128xf32> to vector<1x128xf32>
    %41 = arith.select %29, %39, %40 : vector<1x128xi1>, vector<1x128xf32>
    %42 = vector.extract_strided_slice %10 {offsets = [4, 0], sizes = [1, 128], strides = [1, 1]} : vector<8x128xf32> to vector<1x128xf32>
    %43 = vector.extract_strided_slice %10 {offsets = [3, 0], sizes = [1, 128], strides = [1, 1]} : vector<8x128xf32> to vector<1x128xf32>
    %44 = arith.select %29, %42, %43 : vector<1x128xi1>, vector<1x128xf32>
    %45 = vector.extract_strided_slice %10 {offsets = [5, 0], sizes = [1, 128], strides = [1, 1]} : vector<8x128xf32> to vector<1x128xf32>
    %46 = vector.extract_strided_slice %10 {offsets = [2, 0], sizes = [1, 128], strides = [1, 1]} : vector<8x128xf32> to vector<1x128xf32>
    %47 = arith.select %29, %45, %46 : vector<1x128xi1>, vector<1x128xf32>
    %48 = vector.extract_strided_slice %10 {offsets = [6, 0], sizes = [1, 128], strides = [1, 1]} : vector<8x128xf32> to vector<1x128xf32>
    %49 = vector.extract_strided_slice %10 {offsets = [1, 0], sizes = [1, 128], strides = [1, 1]} : vector<8x128xf32> to vector<1x128xf32>
    %50 = arith.select %29, %48, %49 : vector<1x128xi1>, vector<1x128xf32>
    %51 = vector.extract_strided_slice %10 {offsets = [7, 0], sizes = [1, 128], strides = [1, 1]} : vector<8x128xf32> to vector<1x128xf32>
    %52 = vector.extract_strided_slice %10 {offsets = [0, 0], sizes = [1, 128], strides = [1, 1]} : vector<8x128xf32> to vector<1x128xf32>
    %53 = arith.select %29, %51, %52 : vector<1x128xi1>, vector<1x128xf32>
    %c0_8 = arith.constant 0 : index
    %c0_9 = arith.constant 0 : index
    %54 = vector.load %arg3[%c0_8, %c0_9] : memref<32x128xf32, #tpu.memory_space<vmem>>, vector<32x128xf32>
    %c0_10 = arith.constant 0 : index
    %c0_11 = arith.constant 0 : index
    %55 = vector.load %arg4[%c0_10, %c0_11] : memref<1x32xf32, #tpu.memory_space<vmem>>, vector<1x32xf32>
    %c0_12 = arith.constant 0 : index
    %c0_13 = arith.constant 0 : index
    %56 = vector.load %arg5[%c0_12, %c0_13] : memref<1x32xf32, #tpu.memory_space<vmem>>, vector<1x32xf32>
    %cst_14 = arith.constant dense<0.000000e+00> : vector<1x128xf32>
    %57 = tpu.matmul %55, %54, %cst_14 {dimension_numbers = #tpu.dot_dimension_numbers<[1], [0], [0], [1], [0, 0, 1, 1], [], []>} : vector<1x32xf32>, vector<32x128xf32>, vector<1x128xf32> -> vector<1x128xf32>
    %58 = arith.addf %32, %57 : vector<1x128xf32>
    %59 = vector.extract_strided_slice %58 {offsets = [0, 0], sizes = [1, 96], strides = [1, 1]} : vector<1x128xf32> to vector<1x96xf32>
    %60 = arith.negf %59 : vector<1x96xf32>
    %61 = math.exp %60 : vector<1x96xf32>
    %cst_15 = arith.constant 1.000000e+00 : f32
    %62 = vector.broadcast %cst_15 : f32 to vector<1x96xf32>
    %63 = arith.addf %62, %61 : vector<1x96xf32>
    %64 = arith.divf %62, %63 : vector<1x96xf32>
    %65 = vector.extract_strided_slice %64 {offsets = [0, 0], sizes = [1, 32], strides = [1, 1]} : vector<1x96xf32> to vector<1x32xf32>
    %66 = vector.extract_strided_slice %64 {offsets = [0, 32], sizes = [1, 32], strides = [1, 1]} : vector<1x96xf32> to vector<1x32xf32>
    %67 = vector.extract_strided_slice %64 {offsets = [0, 64], sizes = [1, 32], strides = [1, 1]} : vector<1x96xf32> to vector<1x32xf32>
    %68 = vector.extract_strided_slice %58 {offsets = [0, 96], sizes = [1, 32], strides = [1, 1]} : vector<1x128xf32> to vector<1x32xf32>
    %69 = math.tanh %68 : vector<1x32xf32>
    %70 = arith.mulf %66, %56 : vector<1x32xf32>
    %71 = arith.mulf %65, %69 : vector<1x32xf32>
    %72 = arith.addf %70, %71 : vector<1x32xf32>
    %73 = math.tanh %72 : vector<1x32xf32>
    %74 = arith.mulf %67, %73 : vector<1x32xf32>
    %cst_16 = arith.constant dense<0.000000e+00> : vector<1x128xf32>
    %75 = tpu.matmul %74, %54, %cst_16 {dimension_numbers = #tpu.dot_dimension_numbers<[1], [0], [0], [1], [0, 0, 1, 1], [], []>} : vector<1x32xf32>, vector<32x128xf32>, vector<1x128xf32> -> vector<1x128xf32>
    %76 = arith.addf %35, %75 : vector<1x128xf32>
    %77 = vector.extract_strided_slice %76 {offsets = [0, 0], sizes = [1, 96], strides = [1, 1]} : vector<1x128xf32> to vector<1x96xf32>
    %78 = arith.negf %77 : vector<1x96xf32>
    %79 = math.exp %78 : vector<1x96xf32>
    %cst_17 = arith.constant 1.000000e+00 : f32
    %80 = vector.broadcast %cst_17 : f32 to vector<1x96xf32>
    %81 = arith.addf %80, %79 : vector<1x96xf32>
    %82 = arith.divf %80, %81 : vector<1x96xf32>
    %83 = vector.extract_strided_slice %82 {offsets = [0, 0], sizes = [1, 32], strides = [1, 1]} : vector<1x96xf32> to vector<1x32xf32>
    %84 = vector.extract_strided_slice %82 {offsets = [0, 32], sizes = [1, 32], strides = [1, 1]} : vector<1x96xf32> to vector<1x32xf32>
    %85 = vector.extract_strided_slice %82 {offsets = [0, 64], sizes = [1, 32], strides = [1, 1]} : vector<1x96xf32> to vector<1x32xf32>
    %86 = vector.extract_strided_slice %76 {offsets = [0, 96], sizes = [1, 32], strides = [1, 1]} : vector<1x128xf32> to vector<1x32xf32>
    %87 = math.tanh %86 : vector<1x32xf32>
    %88 = arith.mulf %84, %72 : vector<1x32xf32>
    %89 = arith.mulf %83, %87 : vector<1x32xf32>
    %90 = arith.addf %88, %89 : vector<1x32xf32>
    %91 = math.tanh %90 : vector<1x32xf32>
    %92 = arith.mulf %85, %91 : vector<1x32xf32>
    %cst_18 = arith.constant dense<0.000000e+00> : vector<1x128xf32>
    %93 = tpu.matmul %92, %54, %cst_18 {dimension_numbers = #tpu.dot_dimension_numbers<[1], [0], [0], [1], [0, 0, 1, 1], [], []>} : vector<1x32xf32>, vector<32x128xf32>, vector<1x128xf32> -> vector<1x128xf32>
    %94 = arith.addf %38, %93 : vector<1x128xf32>
    %95 = vector.extract_strided_slice %94 {offsets = [0, 0], sizes = [1, 96], strides = [1, 1]} : vector<1x128xf32> to vector<1x96xf32>
    %96 = arith.negf %95 : vector<1x96xf32>
    %97 = math.exp %96 : vector<1x96xf32>
    %cst_19 = arith.constant 1.000000e+00 : f32
    %98 = vector.broadcast %cst_19 : f32 to vector<1x96xf32>
    %99 = arith.addf %98, %97 : vector<1x96xf32>
    %100 = arith.divf %98, %99 : vector<1x96xf32>
    %101 = vector.extract_strided_slice %100 {offsets = [0, 0], sizes = [1, 32], strides = [1, 1]} : vector<1x96xf32> to vector<1x32xf32>
    %102 = vector.extract_strided_slice %100 {offsets = [0, 32], sizes = [1, 32], strides = [1, 1]} : vector<1x96xf32> to vector<1x32xf32>
    %103 = vector.extract_strided_slice %100 {offsets = [0, 64], sizes = [1, 32], strides = [1, 1]} : vector<1x96xf32> to vector<1x32xf32>
    %104 = vector.extract_strided_slice %94 {offsets = [0, 96], sizes = [1, 32], strides = [1, 1]} : vector<1x128xf32> to vector<1x32xf32>
    %105 = math.tanh %104 : vector<1x32xf32>
    %106 = arith.mulf %102, %90 : vector<1x32xf32>
    %107 = arith.mulf %101, %105 : vector<1x32xf32>
    %108 = arith.addf %106, %107 : vector<1x32xf32>
    %109 = math.tanh %108 : vector<1x32xf32>
    %110 = arith.mulf %103, %109 : vector<1x32xf32>
    %cst_20 = arith.constant dense<0.000000e+00> : vector<1x128xf32>
    %111 = tpu.matmul %110, %54, %cst_20 {dimension_numbers = #tpu.dot_dimension_numbers<[1], [0], [0], [1], [0, 0, 1, 1], [], []>} : vector<1x32xf32>, vector<32x128xf32>, vector<1x128xf32> -> vector<1x128xf32>
    %112 = arith.addf %41, %111 : vector<1x128xf32>
    %113 = vector.extract_strided_slice %112 {offsets = [0, 0], sizes = [1, 96], strides = [1, 1]} : vector<1x128xf32> to vector<1x96xf32>
    %114 = arith.negf %113 : vector<1x96xf32>
    %115 = math.exp %114 : vector<1x96xf32>
    %cst_21 = arith.constant 1.000000e+00 : f32
    %116 = vector.broadcast %cst_21 : f32 to vector<1x96xf32>
    %117 = arith.addf %116, %115 : vector<1x96xf32>
    %118 = arith.divf %116, %117 : vector<1x96xf32>
    %119 = vector.extract_strided_slice %118 {offsets = [0, 0], sizes = [1, 32], strides = [1, 1]} : vector<1x96xf32> to vector<1x32xf32>
    %120 = vector.extract_strided_slice %118 {offsets = [0, 32], sizes = [1, 32], strides = [1, 1]} : vector<1x96xf32> to vector<1x32xf32>
    %121 = vector.extract_strided_slice %118 {offsets = [0, 64], sizes = [1, 32], strides = [1, 1]} : vector<1x96xf32> to vector<1x32xf32>
    %122 = vector.extract_strided_slice %112 {offsets = [0, 96], sizes = [1, 32], strides = [1, 1]} : vector<1x128xf32> to vector<1x32xf32>
    %123 = math.tanh %122 : vector<1x32xf32>
    %124 = arith.mulf %120, %108 : vector<1x32xf32>
    %125 = arith.mulf %119, %123 : vector<1x32xf32>
    %126 = arith.addf %124, %125 : vector<1x32xf32>
    %127 = math.tanh %126 : vector<1x32xf32>
    %128 = arith.mulf %121, %127 : vector<1x32xf32>
    %cst_22 = arith.constant dense<0.000000e+00> : vector<1x128xf32>
    %129 = tpu.matmul %128, %54, %cst_22 {dimension_numbers = #tpu.dot_dimension_numbers<[1], [0], [0], [1], [0, 0, 1, 1], [], []>} : vector<1x32xf32>, vector<32x128xf32>, vector<1x128xf32> -> vector<1x128xf32>
    %130 = arith.addf %44, %129 : vector<1x128xf32>
    %131 = vector.extract_strided_slice %130 {offsets = [0, 0], sizes = [1, 96], strides = [1, 1]} : vector<1x128xf32> to vector<1x96xf32>
    %132 = arith.negf %131 : vector<1x96xf32>
    %133 = math.exp %132 : vector<1x96xf32>
    %cst_23 = arith.constant 1.000000e+00 : f32
    %134 = vector.broadcast %cst_23 : f32 to vector<1x96xf32>
    %135 = arith.addf %134, %133 : vector<1x96xf32>
    %136 = arith.divf %134, %135 : vector<1x96xf32>
    %137 = vector.extract_strided_slice %136 {offsets = [0, 0], sizes = [1, 32], strides = [1, 1]} : vector<1x96xf32> to vector<1x32xf32>
    %138 = vector.extract_strided_slice %136 {offsets = [0, 32], sizes = [1, 32], strides = [1, 1]} : vector<1x96xf32> to vector<1x32xf32>
    %139 = vector.extract_strided_slice %136 {offsets = [0, 64], sizes = [1, 32], strides = [1, 1]} : vector<1x96xf32> to vector<1x32xf32>
    %140 = vector.extract_strided_slice %130 {offsets = [0, 96], sizes = [1, 32], strides = [1, 1]} : vector<1x128xf32> to vector<1x32xf32>
    %141 = math.tanh %140 : vector<1x32xf32>
    %142 = arith.mulf %138, %126 : vector<1x32xf32>
    %143 = arith.mulf %137, %141 : vector<1x32xf32>
    %144 = arith.addf %142, %143 : vector<1x32xf32>
    %145 = math.tanh %144 : vector<1x32xf32>
    %146 = arith.mulf %139, %145 : vector<1x32xf32>
    %cst_24 = arith.constant dense<0.000000e+00> : vector<1x128xf32>
    %147 = tpu.matmul %146, %54, %cst_24 {dimension_numbers = #tpu.dot_dimension_numbers<[1], [0], [0], [1], [0, 0, 1, 1], [], []>} : vector<1x32xf32>, vector<32x128xf32>, vector<1x128xf32> -> vector<1x128xf32>
    %148 = arith.addf %47, %147 : vector<1x128xf32>
    %149 = vector.extract_strided_slice %148 {offsets = [0, 0], sizes = [1, 96], strides = [1, 1]} : vector<1x128xf32> to vector<1x96xf32>
    %150 = arith.negf %149 : vector<1x96xf32>
    %151 = math.exp %150 : vector<1x96xf32>
    %cst_25 = arith.constant 1.000000e+00 : f32
    %152 = vector.broadcast %cst_25 : f32 to vector<1x96xf32>
    %153 = arith.addf %152, %151 : vector<1x96xf32>
    %154 = arith.divf %152, %153 : vector<1x96xf32>
    %155 = vector.extract_strided_slice %154 {offsets = [0, 0], sizes = [1, 32], strides = [1, 1]} : vector<1x96xf32> to vector<1x32xf32>
    %156 = vector.extract_strided_slice %154 {offsets = [0, 32], sizes = [1, 32], strides = [1, 1]} : vector<1x96xf32> to vector<1x32xf32>
    %157 = vector.extract_strided_slice %154 {offsets = [0, 64], sizes = [1, 32], strides = [1, 1]} : vector<1x96xf32> to vector<1x32xf32>
    %158 = vector.extract_strided_slice %148 {offsets = [0, 96], sizes = [1, 32], strides = [1, 1]} : vector<1x128xf32> to vector<1x32xf32>
    %159 = math.tanh %158 : vector<1x32xf32>
    %160 = arith.mulf %156, %144 : vector<1x32xf32>
    %161 = arith.mulf %155, %159 : vector<1x32xf32>
    %162 = arith.addf %160, %161 : vector<1x32xf32>
    %163 = math.tanh %162 : vector<1x32xf32>
    %164 = arith.mulf %157, %163 : vector<1x32xf32>
    %cst_26 = arith.constant dense<0.000000e+00> : vector<1x128xf32>
    %165 = tpu.matmul %164, %54, %cst_26 {dimension_numbers = #tpu.dot_dimension_numbers<[1], [0], [0], [1], [0, 0, 1, 1], [], []>} : vector<1x32xf32>, vector<32x128xf32>, vector<1x128xf32> -> vector<1x128xf32>
    %166 = arith.addf %50, %165 : vector<1x128xf32>
    %167 = vector.extract_strided_slice %166 {offsets = [0, 0], sizes = [1, 96], strides = [1, 1]} : vector<1x128xf32> to vector<1x96xf32>
    %168 = arith.negf %167 : vector<1x96xf32>
    %169 = math.exp %168 : vector<1x96xf32>
    %cst_27 = arith.constant 1.000000e+00 : f32
    %170 = vector.broadcast %cst_27 : f32 to vector<1x96xf32>
    %171 = arith.addf %170, %169 : vector<1x96xf32>
    %172 = arith.divf %170, %171 : vector<1x96xf32>
    %173 = vector.extract_strided_slice %172 {offsets = [0, 0], sizes = [1, 32], strides = [1, 1]} : vector<1x96xf32> to vector<1x32xf32>
    %174 = vector.extract_strided_slice %172 {offsets = [0, 32], sizes = [1, 32], strides = [1, 1]} : vector<1x96xf32> to vector<1x32xf32>
    %175 = vector.extract_strided_slice %172 {offsets = [0, 64], sizes = [1, 32], strides = [1, 1]} : vector<1x96xf32> to vector<1x32xf32>
    %176 = vector.extract_strided_slice %166 {offsets = [0, 96], sizes = [1, 32], strides = [1, 1]} : vector<1x128xf32> to vector<1x32xf32>
    %177 = math.tanh %176 : vector<1x32xf32>
    %178 = arith.mulf %174, %162 : vector<1x32xf32>
    %179 = arith.mulf %173, %177 : vector<1x32xf32>
    %180 = arith.addf %178, %179 : vector<1x32xf32>
    %181 = math.tanh %180 : vector<1x32xf32>
    %182 = arith.mulf %175, %181 : vector<1x32xf32>
    %cst_28 = arith.constant dense<0.000000e+00> : vector<1x128xf32>
    %183 = tpu.matmul %182, %54, %cst_28 {dimension_numbers = #tpu.dot_dimension_numbers<[1], [0], [0], [1], [0, 0, 1, 1], [], []>} : vector<1x32xf32>, vector<32x128xf32>, vector<1x128xf32> -> vector<1x128xf32>
    %184 = arith.addf %53, %183 : vector<1x128xf32>
    %185 = vector.extract_strided_slice %184 {offsets = [0, 0], sizes = [1, 96], strides = [1, 1]} : vector<1x128xf32> to vector<1x96xf32>
    %186 = arith.negf %185 : vector<1x96xf32>
    %187 = math.exp %186 : vector<1x96xf32>
    %cst_29 = arith.constant 1.000000e+00 : f32
    %188 = vector.broadcast %cst_29 : f32 to vector<1x96xf32>
    %189 = arith.addf %188, %187 : vector<1x96xf32>
    %190 = arith.divf %188, %189 : vector<1x96xf32>
    %191 = vector.extract_strided_slice %190 {offsets = [0, 0], sizes = [1, 32], strides = [1, 1]} : vector<1x96xf32> to vector<1x32xf32>
    %192 = vector.extract_strided_slice %190 {offsets = [0, 32], sizes = [1, 32], strides = [1, 1]} : vector<1x96xf32> to vector<1x32xf32>
    %193 = vector.extract_strided_slice %190 {offsets = [0, 64], sizes = [1, 32], strides = [1, 1]} : vector<1x96xf32> to vector<1x32xf32>
    %194 = vector.extract_strided_slice %184 {offsets = [0, 96], sizes = [1, 32], strides = [1, 1]} : vector<1x128xf32> to vector<1x32xf32>
    %195 = math.tanh %194 : vector<1x32xf32>
    %196 = arith.mulf %192, %180 : vector<1x32xf32>
    %197 = arith.mulf %191, %195 : vector<1x32xf32>
    %198 = arith.addf %196, %197 : vector<1x32xf32>
    %199 = math.tanh %198 : vector<1x32xf32>
    %200 = arith.mulf %193, %199 : vector<1x32xf32>
    %201 = tpu.iota {dimensions = array<i32: 1>} : vector<1x32xi32>
    %c16_i32_30 = arith.constant 16 : i32
    %202 = vector.broadcast %c16_i32_30 : i32 to vector<1x32xi32>
    %203 = arith.cmpi slt, %201, %202 : vector<1x32xi32>
    %204 = arith.select %203, %74, %200 : vector<1x32xi1>, vector<1x32xf32>
    %205 = arith.select %203, %92, %182 : vector<1x32xi1>, vector<1x32xf32>
    %206 = arith.select %203, %110, %164 : vector<1x32xi1>, vector<1x32xf32>
    %207 = arith.select %203, %128, %146 : vector<1x32xi1>, vector<1x32xf32>
    %208 = arith.select %203, %146, %128 : vector<1x32xi1>, vector<1x32xf32>
    %209 = arith.select %203, %164, %110 : vector<1x32xi1>, vector<1x32xf32>
    %210 = arith.select %203, %182, %92 : vector<1x32xi1>, vector<1x32xf32>
    %211 = arith.select %203, %200, %74 : vector<1x32xi1>, vector<1x32xf32>
    %212 = tpu.concatenate %204, %205, %206, %207, %208, %209, %210, %211 in 0 : vector<1x32xf32>, vector<1x32xf32>, vector<1x32xf32>, vector<1x32xf32>, vector<1x32xf32>, vector<1x32xf32>, vector<1x32xf32>, vector<1x32xf32> -> vector<8x32xf32>
    %c0_31 = arith.constant 0 : index
    %c0_32 = arith.constant 0 : index
    %213 = vector.load %arg6[%c0_31, %c0_32] : memref<32x8xf32, #tpu.memory_space<vmem>>, vector<32x8xf32>
    %cst_33 = arith.constant dense<0.000000e+00> : vector<8x8xf32>
    %214 = tpu.matmul %212, %213, %cst_33 {dimension_numbers = #tpu.dot_dimension_numbers<[1], [0], [0], [1], [0, 0, 1, 1], [], []>} : vector<8x32xf32>, vector<32x8xf32>, vector<8x8xf32> -> vector<8x8xf32>
    %c0_34 = arith.constant 0 : index
    %c0_35 = arith.constant 0 : index
    %215 = vector.load %arg7[%c0_34, %c0_35] : memref<1x8xf32, #tpu.memory_space<vmem>>, vector<1x8xf32>
    %216 = vector.broadcast %215 : vector<1x8xf32> to vector<8x8xf32>
    %217 = arith.addf %214, %216 : vector<8x8xf32>
    %c0_36 = arith.constant 0 : index
    %c0_37 = arith.constant 0 : index
    %218 = vector.load %arg12[%c0_36, %c0_37] : memref<8x8xf32, #tpu.memory_space<vmem>>, vector<8x8xf32>
    tpu.vector_store %arg12[%c0_36, %c0_37], %217 {strides = array<i32>} : memref<8x8xf32, #tpu.memory_space<vmem>>, vector<8x8xf32>,
    %c0_38 = arith.constant 0 : index
    %c0_39 = arith.constant 0 : index
    %219 = vector.load %arg8[%c0_38, %c0_39] : memref<8x8xf32, #tpu.memory_space<vmem>>, vector<8x8xf32>
    %c0_40 = arith.constant 0 : index
    %c0_41 = arith.constant 0 : index
    %220 = vector.load %arg9[%c0_40, %c0_41] : memref<8x8xf32, #tpu.memory_space<vmem>>, vector<8x8xf32>
    %221 = tpu.iota {dimensions = array<i32: 1>} : vector<1x8xi32>
    %222 = arith.sitofp %221 : vector<1x8xi32> to vector<1x8xf32>
    %223 = tpu.iota {dimensions = array<i32: 0>} : vector<8x1xi32>
    %224 = arith.sitofp %223 : vector<8x1xi32> to vector<8x1xf32>
    %225 = tpu.iota {dimensions = array<i32: 1>} : vector<8x8xi32>
    %226 = arith.sitofp %225 : vector<8x8xi32> to vector<8x8xf32>
    %227 = tpu.iota {dimensions = array<i32: 0>} : vector<8x8xi32>
    %228 = arith.sitofp %227 : vector<8x8xi32> to vector<8x8xf32>
    %229 = tpu.iota {dimensions = array<i32: 0>} : vector<8x8xi32>
    %230 = tpu.iota {dimensions = array<i32: 1>} : vector<8x8xi32>
    %231 = arith.cmpi eq, %229, %230 : vector<8x8xi32>
    %232 = arith.extui %231 : vector<8x8xi1> to vector<8x8xi32>
    %233 = arith.sitofp %232 : vector<8x8xi32> to vector<8x8xf32>
    %234 = tpu.iota {dimensions = array<i32: 1>} : vector<1x8xi32>
    %235 = arith.sitofp %234 : vector<1x8xi32> to vector<1x8xf32>
    %cst_42 = arith.constant 3.000000e+00 : f32
    %236 = vector.broadcast %cst_42 : f32 to vector<1x8xf32>
    %237 = arith.cmpf oeq, %222, %236 : vector<1x8xf32>
    %cst_43 = arith.constant 5.000000e+00 : f32
    %238 = vector.broadcast %cst_43 : f32 to vector<1x8xf32>
    %239 = arith.cmpf olt, %222, %238 : vector<1x8xf32>
    %cst_44 = arith.constant -1.000000e+04 : f32
    %cst_45 = arith.constant -1.000000e+09 : f32
    %240 = vector.broadcast %cst_44 : f32 to vector<1x8xf32>
    %241 = vector.broadcast %cst_45 : f32 to vector<1x8xf32>
    %242 = arith.select %239, %240, %241 : vector<1x8xi1>, vector<1x8xf32>
    %cst_46 = arith.constant 0.000000e+00 : f32
    %243 = vector.broadcast %cst_46 : f32 to vector<1x8xf32>
    %244 = arith.select %237, %243, %242 : vector<1x8xi1>, vector<1x8xf32>
    %245 = vector.extract_strided_slice %217 {offsets = [0, 0], sizes = [1, 8], strides = [1, 1]} : vector<8x8xf32> to vector<1x8xf32>
    %246 = vector.extract_strided_slice %217 {offsets = [1, 0], sizes = [1, 8], strides = [1, 1]} : vector<8x8xf32> to vector<1x8xf32>
    %247 = vector.extract_strided_slice %217 {offsets = [2, 0], sizes = [1, 8], strides = [1, 1]} : vector<8x8xf32> to vector<1x8xf32>
    %248 = vector.extract_strided_slice %217 {offsets = [3, 0], sizes = [1, 8], strides = [1, 1]} : vector<8x8xf32> to vector<1x8xf32>
    %249 = vector.extract_strided_slice %217 {offsets = [4, 0], sizes = [1, 8], strides = [1, 1]} : vector<8x8xf32> to vector<1x8xf32>
    %250 = vector.extract_strided_slice %217 {offsets = [5, 0], sizes = [1, 8], strides = [1, 1]} : vector<8x8xf32> to vector<1x8xf32>
    %251 = vector.extract_strided_slice %217 {offsets = [6, 0], sizes = [1, 8], strides = [1, 1]} : vector<8x8xf32> to vector<1x8xf32>
    %252 = vector.extract_strided_slice %217 {offsets = [7, 0], sizes = [1, 8], strides = [1, 1]} : vector<8x8xf32> to vector<1x8xf32>
    %253 = vector.broadcast %245 : vector<1x8xf32> to vector<8x8xf32>
    %254 = arith.mulf %253, %233 : vector<8x8xf32>
    %cst_47 = arith.constant dense<0.000000e+00> : vector<8xf32>
    %255 = vector.multi_reduction <add>, %254, %cst_47 [1] : vector<8x8xf32> to vector<8xf32>
    %256 = vector.shape_cast %255 : vector<8xf32> to vector<8x1xf32>
    %257 = vector.broadcast %247 : vector<1x8xf32> to vector<8x8xf32>
    %258 = arith.mulf %257, %233 : vector<8x8xf32>
    %cst_48 = arith.constant dense<0.000000e+00> : vector<8xf32>
    %259 = vector.multi_reduction <add>, %258, %cst_48 [1] : vector<8x8xf32> to vector<8xf32>
    %260 = vector.shape_cast %259 : vector<8xf32> to vector<8x1xf32>
    %261 = vector.broadcast %249 : vector<1x8xf32> to vector<8x8xf32>
    %262 = arith.mulf %261, %233 : vector<8x8xf32>
    %cst_49 = arith.constant dense<0.000000e+00> : vector<8xf32>
    %263 = vector.multi_reduction <add>, %262, %cst_49 [1] : vector<8x8xf32> to vector<8xf32>
    %264 = vector.shape_cast %263 : vector<8xf32> to vector<8x1xf32>
    %265 = vector.broadcast %251 : vector<1x8xf32> to vector<8x8xf32>
    %266 = arith.mulf %265, %233 : vector<8x8xf32>
    %cst_50 = arith.constant dense<0.000000e+00> : vector<8xf32>
    %267 = vector.multi_reduction <add>, %266, %cst_50 [1] : vector<8x8xf32> to vector<8xf32>
    %268 = vector.shape_cast %267 : vector<8xf32> to vector<8x1xf32>
    %269 = vector.broadcast %244 : vector<1x8xf32> to vector<8x8xf32>
    %270 = arith.addf %219, %269 : vector<8x8xf32>
    %cst_51 = arith.constant dense<0xFF800000> : vector<8xf32>
    %271 = vector.multi_reduction <maximumf>, %270, %cst_51 [1] : vector<8x8xf32> to vector<8xf32>
    %272 = vector.shape_cast %271 : vector<8xf32> to vector<8x1xf32>
    %273 = arith.addf %272, %256 : vector<8x1xf32>
    %274 = vector.broadcast %273 : vector<8x1xf32> to vector<8x8xf32>
    %275 = arith.addf %220, %274 : vector<8x8xf32>
    %cst_52 = arith.constant dense<0xFF800000> : vector<8xf32>
    %276 = vector.multi_reduction <maximumf>, %275, %cst_52 [0] : vector<8x8xf32> to vector<8xf32>
    %277 = vector.shape_cast %276 : vector<8xf32> to vector<1x8xf32>
    %278 = vector.broadcast %277 : vector<1x8xf32> to vector<8x8xf32>
    %279 = arith.cmpf oge, %275, %278 : vector<8x8xf32>
    %cst_53 = arith.constant 8.000000e+00 : f32
    %280 = vector.broadcast %cst_53 : f32 to vector<8x8xf32>
    %281 = arith.select %279, %228, %280 : vector<8x8xi1>, vector<8x8xf32>
    %cst_54 = arith.constant dense<0x7F800000> : vector<8xf32>
    %282 = vector.multi_reduction <minimumf>, %281, %cst_54 [0] : vector<8x8xf32> to vector<8xf32>
    %283 = vector.shape_cast %282 : vector<8xf32> to vector<1x8xf32>
    %284 = arith.addf %277, %246 : vector<1x8xf32>
    %285 = vector.broadcast %284 : vector<1x8xf32> to vector<8x8xf32>
    %286 = arith.addf %219, %285 : vector<8x8xf32>
    %cst_55 = arith.constant dense<0xFF800000> : vector<8xf32>
    %287 = vector.multi_reduction <maximumf>, %286, %cst_55 [1] : vector<8x8xf32> to vector<8xf32>
    %288 = vector.shape_cast %287 : vector<8xf32> to vector<8x1xf32>
    %289 = vector.broadcast %288 : vector<8x1xf32> to vector<8x8xf32>
    %290 = arith.cmpf oge, %286, %289 : vector<8x8xf32>
    %cst_56 = arith.constant 8.000000e+00 : f32
    %291 = vector.broadcast %cst_56 : f32 to vector<8x8xf32>
    %292 = arith.select %290, %226, %291 : vector<8x8xi1>, vector<8x8xf32>
    %cst_57 = arith.constant dense<0x7F800000> : vector<8xf32>
    %293 = vector.multi_reduction <minimumf>, %292, %cst_57 [1] : vector<8x8xf32> to vector<8xf32>
    %294 = vector.shape_cast %293 : vector<8xf32> to vector<8x1xf32>
    %295 = arith.addf %288, %260 : vector<8x1xf32>
    %296 = vector.broadcast %295 : vector<8x1xf32> to vector<8x8xf32>
    %297 = arith.addf %220, %296 : vector<8x8xf32>
    %cst_58 = arith.constant dense<0xFF800000> : vector<8xf32>
    %298 = vector.multi_reduction <maximumf>, %297, %cst_58 [0] : vector<8x8xf32> to vector<8xf32>
    %299 = vector.shape_cast %298 : vector<8xf32> to vector<1x8xf32>
    %300 = vector.broadcast %299 : vector<1x8xf32> to vector<8x8xf32>
    %301 = arith.cmpf oge, %297, %300 : vector<8x8xf32>
    %cst_59 = arith.constant 8.000000e+00 : f32
    %302 = vector.broadcast %cst_59 : f32 to vector<8x8xf32>
    %303 = arith.select %301, %228, %302 : vector<8x8xi1>, vector<8x8xf32>
    %cst_60 = arith.constant dense<0x7F800000> : vector<8xf32>
    %304 = vector.multi_reduction <minimumf>, %303, %cst_60 [0] : vector<8x8xf32> to vector<8xf32>
    %305 = vector.shape_cast %304 : vector<8xf32> to vector<1x8xf32>
    %306 = arith.addf %299, %248 : vector<1x8xf32>
    %307 = vector.broadcast %306 : vector<1x8xf32> to vector<8x8xf32>
    %308 = arith.addf %219, %307 : vector<8x8xf32>
    %cst_61 = arith.constant dense<0xFF800000> : vector<8xf32>
    %309 = vector.multi_reduction <maximumf>, %308, %cst_61 [1] : vector<8x8xf32> to vector<8xf32>
    %310 = vector.shape_cast %309 : vector<8xf32> to vector<8x1xf32>
    %311 = vector.broadcast %310 : vector<8x1xf32> to vector<8x8xf32>
    %312 = arith.cmpf oge, %308, %311 : vector<8x8xf32>
    %cst_62 = arith.constant 8.000000e+00 : f32
    %313 = vector.broadcast %cst_62 : f32 to vector<8x8xf32>
    %314 = arith.select %312, %226, %313 : vector<8x8xi1>, vector<8x8xf32>
    %cst_63 = arith.constant dense<0x7F800000> : vector<8xf32>
    %315 = vector.multi_reduction <minimumf>, %314, %cst_63 [1] : vector<8x8xf32> to vector<8xf32>
    %316 = vector.shape_cast %315 : vector<8xf32> to vector<8x1xf32>
    %317 = arith.addf %310, %264 : vector<8x1xf32>
    %318 = vector.broadcast %317 : vector<8x1xf32> to vector<8x8xf32>
    %319 = arith.addf %220, %318 : vector<8x8xf32>
    %cst_64 = arith.constant dense<0xFF800000> : vector<8xf32>
    %320 = vector.multi_reduction <maximumf>, %319, %cst_64 [0] : vector<8x8xf32> to vector<8xf32>
    %321 = vector.shape_cast %320 : vector<8xf32> to vector<1x8xf32>
    %322 = vector.broadcast %321 : vector<1x8xf32> to vector<8x8xf32>
    %323 = arith.cmpf oge, %319, %322 : vector<8x8xf32>
    %cst_65 = arith.constant 8.000000e+00 : f32
    %324 = vector.broadcast %cst_65 : f32 to vector<8x8xf32>
    %325 = arith.select %323, %228, %324 : vector<8x8xi1>, vector<8x8xf32>
    %cst_66 = arith.constant dense<0x7F800000> : vector<8xf32>
    %326 = vector.multi_reduction <minimumf>, %325, %cst_66 [0] : vector<8x8xf32> to vector<8xf32>
    %327 = vector.shape_cast %326 : vector<8xf32> to vector<1x8xf32>
    %328 = arith.addf %321, %250 : vector<1x8xf32>
    %329 = vector.broadcast %328 : vector<1x8xf32> to vector<8x8xf32>
    %330 = arith.addf %219, %329 : vector<8x8xf32>
    %cst_67 = arith.constant dense<0xFF800000> : vector<8xf32>
    %331 = vector.multi_reduction <maximumf>, %330, %cst_67 [1] : vector<8x8xf32> to vector<8xf32>
    %332 = vector.shape_cast %331 : vector<8xf32> to vector<8x1xf32>
    %333 = vector.broadcast %332 : vector<8x1xf32> to vector<8x8xf32>
    %334 = arith.cmpf oge, %330, %333 : vector<8x8xf32>
    %cst_68 = arith.constant 8.000000e+00 : f32
    %335 = vector.broadcast %cst_68 : f32 to vector<8x8xf32>
    %336 = arith.select %334, %226, %335 : vector<8x8xi1>, vector<8x8xf32>
    %cst_69 = arith.constant dense<0x7F800000> : vector<8xf32>
    %337 = vector.multi_reduction <minimumf>, %336, %cst_69 [1] : vector<8x8xf32> to vector<8xf32>
    %338 = vector.shape_cast %337 : vector<8xf32> to vector<8x1xf32>
    %339 = arith.addf %332, %268 : vector<8x1xf32>
    %340 = vector.broadcast %339 : vector<8x1xf32> to vector<8x8xf32>
    %341 = arith.addf %220, %340 : vector<8x8xf32>
    %cst_70 = arith.constant dense<0xFF800000> : vector<8xf32>
    %342 = vector.multi_reduction <maximumf>, %341, %cst_70 [0] : vector<8x8xf32> to vector<8xf32>
    %343 = vector.shape_cast %342 : vector<8xf32> to vector<1x8xf32>
    %344 = vector.broadcast %343 : vector<1x8xf32> to vector<8x8xf32>
    %345 = arith.cmpf oge, %341, %344 : vector<8x8xf32>
    %cst_71 = arith.constant 8.000000e+00 : f32
    %346 = vector.broadcast %cst_71 : f32 to vector<8x8xf32>
    %347 = arith.select %345, %228, %346 : vector<8x8xi1>, vector<8x8xf32>
    %cst_72 = arith.constant dense<0x7F800000> : vector<8xf32>
    %348 = vector.multi_reduction <minimumf>, %347, %cst_72 [0] : vector<8x8xf32> to vector<8xf32>
    %349 = vector.shape_cast %348 : vector<8xf32> to vector<1x8xf32>
    %350 = arith.addf %343, %252 : vector<1x8xf32>
    %351 = vector.extract_strided_slice %219 {offsets = [4, 0], sizes = [1, 8], strides = [1, 1]} : vector<8x8xf32> to vector<1x8xf32>
    %352 = arith.addf %350, %351 : vector<1x8xf32>
    %cst_73 = arith.constant dense<0xFF800000> : vector<1xf32>
    %353 = vector.multi_reduction <maximumf>, %352, %cst_73 [1] : vector<1x8xf32> to vector<1xf32>
    %354 = vector.shape_cast %353 : vector<1xf32> to vector<1x1xf32>
    %355 = vector.broadcast %354 : vector<1x1xf32> to vector<1x8xf32>
    %356 = arith.cmpf oge, %352, %355 : vector<1x8xf32>
    %cst_74 = arith.constant 8.000000e+00 : f32
    %357 = vector.broadcast %cst_74 : f32 to vector<1x8xf32>
    %358 = arith.select %356, %222, %357 : vector<1x8xi1>, vector<1x8xf32>
    %cst_75 = arith.constant dense<0x7F800000> : vector<1xf32>
    %359 = vector.multi_reduction <minimumf>, %358, %cst_75 [1] : vector<1x8xf32> to vector<1xf32>
    %360 = vector.shape_cast %359 : vector<1xf32> to vector<1x1xf32>
    %c0_76 = arith.constant 0 : index
    %c0_77 = arith.constant 0 : index
    %361 = vector.load %arg10[%c0_76, %c0_77] : memref<1x1xf32, #tpu.memory_space<vmem>>, vector<1x1xf32>
    tpu.vector_store %arg10[%c0_76, %c0_77], %354 {strides = array<i32>} : memref<1x1xf32, #tpu.memory_space<vmem>>, vector<1x1xf32>,
    %cst_78 = arith.constant 7.000000e+00 : f32
    %362 = vector.broadcast %cst_78 : f32 to vector<1x8xf32>
    %363 = arith.cmpf oeq, %235, %362 : vector<1x8xf32>
    %cst_79 = arith.constant 0.000000e+00 : f32
    %364 = vector.shape_cast %360 : vector<1x1xf32> to vector<1x1xf32>
    %365 = vector.broadcast %364 : vector<1x1xf32> to vector<1x8xf32>
    %366 = vector.broadcast %cst_79 : f32 to vector<1x8xf32>
    %367 = arith.select %363, %365, %366 : vector<1x8xi1>, vector<1x8xf32>
    %368 = vector.broadcast %360 : vector<1x1xf32> to vector<1x8xf32>
    %369 = arith.cmpf oeq, %222, %368 : vector<1x8xf32>
    %cst_80 = arith.constant 0.000000e+00 : f32
    %370 = vector.broadcast %cst_80 : f32 to vector<1x8xf32>
    %371 = arith.select %369, %349, %370 : vector<1x8xi1>, vector<1x8xf32>
    %cst_81 = arith.constant dense<0.000000e+00> : vector<1xf32>
    %372 = vector.multi_reduction <add>, %371, %cst_81 [1] : vector<1x8xf32> to vector<1xf32>
    %373 = vector.shape_cast %372 : vector<1xf32> to vector<1x1xf32>
    %cst_82 = arith.constant 6.000000e+00 : f32
    %374 = vector.broadcast %cst_82 : f32 to vector<1x8xf32>
    %375 = arith.cmpf oeq, %235, %374 : vector<1x8xf32>
    %376 = vector.shape_cast %373 : vector<1x1xf32> to vector<1x1xf32>
    %377 = vector.broadcast %376 : vector<1x1xf32> to vector<1x8xf32>
    %378 = arith.select %375, %377, %367 : vector<1x8xi1>, vector<1x8xf32>
    %379 = vector.broadcast %373 : vector<1x1xf32> to vector<8x1xf32>
    %380 = arith.cmpf oeq, %224, %379 : vector<8x1xf32>
    %cst_83 = arith.constant 0.000000e+00 : f32
    %381 = vector.broadcast %cst_83 : f32 to vector<8x1xf32>
    %382 = arith.select %380, %338, %381 : vector<8x1xi1>, vector<8x1xf32>
    %cst_84 = arith.constant dense<0.000000e+00> : vector<1xf32>
    %383 = vector.multi_reduction <add>, %382, %cst_84 [0] : vector<8x1xf32> to vector<1xf32>
    %384 = vector.shape_cast %383 : vector<1xf32> to vector<1x1xf32>
    %cst_85 = arith.constant 5.000000e+00 : f32
    %385 = vector.broadcast %cst_85 : f32 to vector<1x8xf32>
    %386 = arith.cmpf oeq, %235, %385 : vector<1x8xf32>
    %387 = vector.shape_cast %384 : vector<1x1xf32> to vector<1x1xf32>
    %388 = vector.broadcast %387 : vector<1x1xf32> to vector<1x8xf32>
    %389 = arith.select %386, %388, %378 : vector<1x8xi1>, vector<1x8xf32>
    %390 = vector.broadcast %384 : vector<1x1xf32> to vector<1x8xf32>
    %391 = arith.cmpf oeq, %222, %390 : vector<1x8xf32>
    %cst_86 = arith.constant 0.000000e+00 : f32
    %392 = vector.broadcast %cst_86 : f32 to vector<1x8xf32>
    %393 = arith.select %391, %327, %392 : vector<1x8xi1>, vector<1x8xf32>
    %cst_87 = arith.constant dense<0.000000e+00> : vector<1xf32>
    %394 = vector.multi_reduction <add>, %393, %cst_87 [1] : vector<1x8xf32> to vector<1xf32>
    %395 = vector.shape_cast %394 : vector<1xf32> to vector<1x1xf32>
    %cst_88 = arith.constant 4.000000e+00 : f32
    %396 = vector.broadcast %cst_88 : f32 to vector<1x8xf32>
    %397 = arith.cmpf oeq, %235, %396 : vector<1x8xf32>
    %398 = vector.shape_cast %395 : vector<1x1xf32> to vector<1x1xf32>
    %399 = vector.broadcast %398 : vector<1x1xf32> to vector<1x8xf32>
    %400 = arith.select %397, %399, %389 : vector<1x8xi1>, vector<1x8xf32>
    %401 = vector.broadcast %395 : vector<1x1xf32> to vector<8x1xf32>
    %402 = arith.cmpf oeq, %224, %401 : vector<8x1xf32>
    %cst_89 = arith.constant 0.000000e+00 : f32
    %403 = vector.broadcast %cst_89 : f32 to vector<8x1xf32>
    %404 = arith.select %402, %316, %403 : vector<8x1xi1>, vector<8x1xf32>
    %cst_90 = arith.constant dense<0.000000e+00> : vector<1xf32>
    %405 = vector.multi_reduction <add>, %404, %cst_90 [0] : vector<8x1xf32> to vector<1xf32>
    %406 = vector.shape_cast %405 : vector<1xf32> to vector<1x1xf32>
    %cst_91 = arith.constant 3.000000e+00 : f32
    %407 = vector.broadcast %cst_91 : f32 to vector<1x8xf32>
    %408 = arith.cmpf oeq, %235, %407 : vector<1x8xf32>
    %409 = vector.shape_cast %406 : vector<1x1xf32> to vector<1x1xf32>
    %410 = vector.broadcast %409 : vector<1x1xf32> to vector<1x8xf32>
    %411 = arith.select %408, %410, %400 : vector<1x8xi1>, vector<1x8xf32>
    %412 = vector.broadcast %406 : vector<1x1xf32> to vector<1x8xf32>
    %413 = arith.cmpf oeq, %222, %412 : vector<1x8xf32>
    %cst_92 = arith.constant 0.000000e+00 : f32
    %414 = vector.broadcast %cst_92 : f32 to vector<1x8xf32>
    %415 = arith.select %413, %305, %414 : vector<1x8xi1>, vector<1x8xf32>
    %cst_93 = arith.constant dense<0.000000e+00> : vector<1xf32>
    %416 = vector.multi_reduction <add>, %415, %cst_93 [1] : vector<1x8xf32> to vector<1xf32>
    %417 = vector.shape_cast %416 : vector<1xf32> to vector<1x1xf32>
    %cst_94 = arith.constant 2.000000e+00 : f32
    %418 = vector.broadcast %cst_94 : f32 to vector<1x8xf32>
    %419 = arith.cmpf oeq, %235, %418 : vector<1x8xf32>
    %420 = vector.shape_cast %417 : vector<1x1xf32> to vector<1x1xf32>
    %421 = vector.broadcast %420 : vector<1x1xf32> to vector<1x8xf32>
    %422 = arith.select %419, %421, %411 : vector<1x8xi1>, vector<1x8xf32>
    %423 = vector.broadcast %417 : vector<1x1xf32> to vector<8x1xf32>
    %424 = arith.cmpf oeq, %224, %423 : vector<8x1xf32>
    %cst_95 = arith.constant 0.000000e+00 : f32
    %425 = vector.broadcast %cst_95 : f32 to vector<8x1xf32>
    %426 = arith.select %424, %294, %425 : vector<8x1xi1>, vector<8x1xf32>
    %cst_96 = arith.constant dense<0.000000e+00> : vector<1xf32>
    %427 = vector.multi_reduction <add>, %426, %cst_96 [0] : vector<8x1xf32> to vector<1xf32>
    %428 = vector.shape_cast %427 : vector<1xf32> to vector<1x1xf32>
    %cst_97 = arith.constant 1.000000e+00 : f32
    %429 = vector.broadcast %cst_97 : f32 to vector<1x8xf32>
    %430 = arith.cmpf oeq, %235, %429 : vector<1x8xf32>
    %431 = vector.shape_cast %428 : vector<1x1xf32> to vector<1x1xf32>
    %432 = vector.broadcast %431 : vector<1x1xf32> to vector<1x8xf32>
    %433 = arith.select %430, %432, %422 : vector<1x8xi1>, vector<1x8xf32>
    %434 = vector.broadcast %428 : vector<1x1xf32> to vector<1x8xf32>
    %435 = arith.cmpf oeq, %222, %434 : vector<1x8xf32>
    %cst_98 = arith.constant 0.000000e+00 : f32
    %436 = vector.broadcast %cst_98 : f32 to vector<1x8xf32>
    %437 = arith.select %435, %283, %436 : vector<1x8xi1>, vector<1x8xf32>
    %cst_99 = arith.constant dense<0.000000e+00> : vector<1xf32>
    %438 = vector.multi_reduction <add>, %437, %cst_99 [1] : vector<1x8xf32> to vector<1xf32>
    %439 = vector.shape_cast %438 : vector<1xf32> to vector<1x1xf32>
    %cst_100 = arith.constant 0.000000e+00 : f32
    %440 = vector.broadcast %cst_100 : f32 to vector<1x8xf32>
    %441 = arith.cmpf oeq, %235, %440 : vector<1x8xf32>
    %442 = vector.shape_cast %439 : vector<1x1xf32> to vector<1x1xf32>
    %443 = vector.broadcast %442 : vector<1x1xf32> to vector<1x8xf32>
    %444 = arith.select %441, %443, %433 : vector<1x8xi1>, vector<1x8xf32>
    %445 = arith.fptosi %444 : vector<1x8xf32> to vector<1x8xi32>
    %c0_101 = arith.constant 0 : index
    %c0_102 = arith.constant 0 : index
    %446 = vector.load %arg11[%c0_101, %c0_102] : memref<1x8xi32, #tpu.memory_space<vmem>>, vector<1x8xi32>
    tpu.vector_store %arg11[%c0_101, %c0_102], %445 {strides = array<i32>} : memref<1x8xi32, #tpu.memory_space<vmem>>, vector<1x8xi32>,
    return
  }
}

</mosaic_0001>

<llo_original>
// kernel: bilstm_crf_forward.1
$region0: #{bilstm_crf_forward.1}
  #allocation0 [shape = 'u32[]', space=smem, size = 0x4, offset = 0x4, fixed_abs, tag = 'smem constant byte address 0x4 - core index']
  #allocation1 [shape = 'u32[144,128]{1,0:T(1,128)}', space=vmem, size = 0x12000, scoped, tag = 'internal scratch']
  %s0 = inlined_call_operand.vmem [shape: s32[8,1], index: 0, kind: input, shape index: {}]
  %s1 = inlined_call_operand.vmem [shape: f32[24,128], index: 1, kind: input, shape index: {}]
  %s2 = inlined_call_operand.vmem [shape: f32[1,128], index: 2, kind: input, shape index: {}]
  %s3 = inlined_call_operand.vmem [shape: f32[32,128], index: 3, kind: input, shape index: {}]
  %s4 = inlined_call_operand.hbm [shape: f32[1,32], index: 4, kind: input, shape index: {}]
  %s5 = inlined_call_operand.hbm [shape: f32[1,32], index: 5, kind: input, shape index: {}]
  %s6 = inlined_call_operand.vmem [shape: f32[32,8], index: 6, kind: input, shape index: {}]
  %s7 = inlined_call_operand.hbm [shape: f32[1,8], index: 7, kind: input, shape index: {}]
  %s8 = inlined_call_operand.hbm [shape: f32[8,8], index: 8, kind: input, shape index: {}]
  %s9 = inlined_call_operand.hbm [shape: f32[8,8], index: 9, kind: input, shape index: {}]
  %s10 = inlined_call_operand.hbm [shape: f32[1,1], index: 10, kind: output, shape index: {0}]
  %s11 = inlined_call_operand.hbm [shape: s32[1,8], index: 11, kind: output, shape index: {1}]
  %s12 = inlined_call_operand.hbm [shape: f32[8,8], index: 12, kind: output, shape index: {2}]
  %13 = xla_tuple %s10, %s11, %s12
  %s14 = sld [smem:[#allocation0]]
  $region86: #{bilstm_crf_forward.1} parent=0
    _
  %s16 = ssub.s32 1, %s14
  %s17 = scalar_select 0, %s16, %s14
  $region1: #{bilstm_crf_forward.1} parent=0
    #allocation2 [shape = 'u8[512]{0}', space=vmem, size = 0x400, scoped, tag = 'input window, operand 4, single buffered']
    #allocation3 [shape = 's32[1]{0}', space=sflag, size = 0x4, scoped, tag = 'scoped memory for bilstm_crf_forward.1']
    #allocation4 [shape = 's32[1]{0}', space=sflag, size = 0x4, scoped, tag = 'scoped memory for bilstm_crf_forward.1']
    #allocation5 [shape = 'u8[512]{0}', space=vmem, size = 0x400, scoped, tag = 'input window, operand 5, single buffered']
    #allocation6 [shape = 's32[1]{0}', space=sflag, size = 0x4, scoped, tag = 'scoped memory for bilstm_crf_forward.1']
    #allocation7 [shape = 'u8[512]{0}', space=vmem, size = 0x400, scoped, tag = 'input window, operand 7, single buffered']
    #allocation8 [shape = 'u8[4096]{0}', space=vmem, size = 0x1000, scoped, tag = 'input window, operand 8, single buffered']
    #allocation9 [shape = 's32[1]{0}', space=sflag, size = 0x4, scoped, tag = 'scoped memory for bilstm_crf_forward.1']
    #allocation10 [shape = 'u8[4096]{0}', space=vmem, size = 0x1000, scoped, tag = 'input window, operand 9, single buffered']
    #allocation11 [shape = 'u8[512]{0}', space=vmem, size = 0x400, scoped, tag = 'output window, operand 0, single buffered']
    #allocation12 [shape = 'u8[512]{0}', space=vmem, size = 0x400, scoped, tag = 'output window, operand 1, single buffered']
    #allocation13 [shape = 's32[1]{0}', space=sflag, size = 0x4, scoped, tag = 'scoped memory for bilstm_crf_forward.1']
    #allocation14 [shape = 'u8[4096]{0}', space=vmem, size = 0x1000, scoped, tag = 'output window, operand 2, single buffered']
    %18 = vsyncpa [#allocation3], 0
    %19 = vsyncpa [#allocation6], 0
    %20 = vsyncpa [#allocation9], 0
    %21 = vsyncpa [#allocation4], 0
    %22 = vsyncpa [#allocation13], 0
    // Predicated region
    $region2: #{bilstm_crf_forward.1} parent=1 // pred_check
      _
    $region3: #{bilstm_crf_forward.1} parent=1 // pred_check_branch
      %24 = sbr.rel (0) target = $region5
    $region4: #{bilstm_crf_forward.1} parent=1 // pred_region
      _
    $region5: #{bilstm_crf_forward.1} parent=1 // pred_fallthru
      _
    // Predicated region
    $region6: #{bilstm_crf_forward.1} parent=1 // pred_check
      _
    $region7: #{bilstm_crf_forward.1} parent=1 // pred_check_branch
      %26 = sbr.rel (0) target = $region9
    $region8: #{bilstm_crf_forward.1} parent=1 // pred_region
      _
    $region9: #{bilstm_crf_forward.1} parent=1 // pred_fallthru
      _
    // Predicated region
    $region10: #{bilstm_crf_forward.1} parent=1 // pred_check
      _
    $region11: #{bilstm_crf_forward.1} parent=1 // pred_check_branch
      %28 = sbr.rel (0) target = $region13
    $region12: #{bilstm_crf_forward.1} parent=1 // pred_region
      _
    $region13: #{bilstm_crf_forward.1} parent=1 // pred_fallthru
      _
    // Predicated region
    $region14: #{bilstm_crf_forward.1} parent=1 // pred_check
      _
    $region15: #{bilstm_crf_forward.1} parent=1 // pred_check_branch
      %30 = sbr.rel (0) target = $region17
    $region16: #{bilstm_crf_forward.1} parent=1 // pred_region
      _
    $region17: #{bilstm_crf_forward.1} parent=1 // pred_fallthru
      _
    // Predicated region
    $region18: #{bilstm_crf_forward.1} parent=1 // pred_check
      _
    $region19: #{bilstm_crf_forward.1} parent=1 // pred_check_branch
      %32 = sbr.rel (0) target = $region21
    $region20: #{bilstm_crf_forward.1} parent=1 // pred_region
      %s34 = ssub.s32 16, 16
      %35 = vsyncadd [#allocation3], %s34
      %s37 = sshll.u32 [#allocation2], 4
      %s38 = int_to_ptr.vmem [resolvable:$true] %s37
      %40 = dma.hbm_to_vmem [thread:$0]  %s4, 16, %s38, [#allocation3]
    $region21: #{bilstm_crf_forward.1} parent=1 // pred_fallthru
      _
    // Predicated region
    $region22: #{bilstm_crf_forward.1} parent=1 // pred_check
      _
    $region23: #{bilstm_crf_forward.1} parent=1 // pred_check_branch
      %42 = sbr.rel (0) target = $region25
    $region24: #{bilstm_crf_forward.1} parent=1 // pred_region
      %s44 = ssub.s32 16, 16
      %45 = vsyncadd [#allocation6], %s44
      %s47 = sshll.u32 [#allocation5], 4
      %s48 = int_to_ptr.vmem [resolvable:$true] %s47
      %50 = dma.hbm_to_vmem [thread:$0]  %s5, 16, %s48, [#allocation6]
    $region25: #{bilstm_crf_forward.1} parent=1 // pred_fallthru
      _
    // Predicated region
    $region26: #{bilstm_crf_forward.1} parent=1 // pred_check
      _
    $region27: #{bilstm_crf_forward.1} parent=1 // pred_check_branch
      %52 = sbr.rel (0) target = $region29
    $region28: #{bilstm_crf_forward.1} parent=1 // pred_region
      _
    $region29: #{bilstm_crf_forward.1} parent=1 // pred_fallthru
      _
    // Predicated region
    $region30: #{bilstm_crf_forward.1} parent=1 // pred_check
      _
    $region31: #{bilstm_crf_forward.1} parent=1 // pred_check_branch
      %54 = sbr.rel (0) target = $region33
    $region32: #{bilstm_crf_forward.1} parent=1 // pred_region
      %s56 = ssub.s32 16, 16
      %57 = vsyncadd [#allocation6], %s56
      %s59 = sshll.u32 [#allocation7], 4
      %s60 = int_to_ptr.vmem [resolvable:$true] %s59
      %62 = dma.hbm_to_vmem [thread:$0]  %s7, 16, %s60, [#allocation6]
    $region33: #{bilstm_crf_forward.1} parent=1 // pred_fallthru
      _
    // Predicated region
    $region34: #{bilstm_crf_forward.1} parent=1 // pred_check
      _
    $region35: #{bilstm_crf_forward.1} parent=1 // pred_check_branch
      %64 = sbr.rel (0) target = $region37
    $region36: #{bilstm_crf_forward.1} parent=1 // pred_region
      %s66 = ssub.s32 128, 128
      %67 = vsyncadd [#allocation9], %s66
      %s69 = sshll.u32 [#allocation8], 4
      %s70 = int_to_ptr.vmem [resolvable:$true] %s69
      %72 = dma.hbm_to_vmem [thread:$0]  %s8, 128, %s70, [#allocation9]
    $region37: #{bilstm_crf_forward.1} parent=1 // pred_fallthru
      _
    // Predicated region
    $region38: #{bilstm_crf_forward.1} parent=1 // pred_check
      _
    $region39: #{bilstm_crf_forward.1} parent=1 // pred_check_branch
      %74 = sbr.rel (0) target = $region41
    $region40: #{bilstm_crf_forward.1} parent=1 // pred_region
      %s76 = ssub.s32 128, 128
      %77 = vsyncadd [#allocation9], %s76
      %s79 = sshll.u32 [#allocation10], 4
      %s80 = int_to_ptr.vmem [resolvable:$true] %s79
      %82 = dma.hbm_to_vmem [thread:$0]  %s9, 128, %s80, [#allocation9]
    $region41: #{bilstm_crf_forward.1} parent=1 // pred_fallthru
      _
    // Predicated region
    $region42: #{bilstm_crf_forward.1} parent=1 // pred_check
      _
    $region43: #{bilstm_crf_forward.1} parent=1 // pred_check_branch
      %84 = sbr.rel (0) target = $region45
    $region44: #{bilstm_crf_forward.1} parent=1 // pred_region
      %85 = dma.done [#allocation3], 16
    $region45: #{bilstm_crf_forward.1} parent=1 // pred_fallthru
      _
    // Predicated region
    $region46: #{bilstm_crf_forward.1} parent=1 // pred_check
      _
    $region47: #{bilstm_crf_forward.1} parent=1 // pred_check_branch
      %87 = sbr.rel (0) target = $region49
    $region48: #{bilstm_crf_forward.1} parent=1 // pred_region
      %88 = dma.done [#allocation6], 16
    $region49: #{bilstm_crf_forward.1} parent=1 // pred_fallthru
      _
    // Predicated region
    $region50: #{bilstm_crf_forward.1} parent=1 // pred_check
      _
    $region51: #{bilstm_crf_forward.1} parent=1 // pred_check_branch
      %90 = sbr.rel (0) target = $region53
    $region52: #{bilstm_crf_forward.1} parent=1 // pred_region
      %91 = dma.done [#allocation6], 16
    $region53: #{bilstm_crf_forward.1} parent=1 // pred_fallthru
      _
    // Predicated region
    $region54: #{bilstm_crf_forward.1} parent=1 // pred_check
      _
    $region55: #{bilstm_crf_forward.1} parent=1 // pred_check_branch
      %93 = sbr.rel (0) target = $region57
    $region56: #{bilstm_crf_forward.1} parent=1 // pred_region
      %94 = dma.done [#allocation9], 128
    $region57: #{bilstm_crf_forward.1} parent=1 // pred_fallthru
      _
    // Predicated region
    $region58: #{bilstm_crf_forward.1} parent=1 // pred_check
      _
    $region59: #{bilstm_crf_forward.1} parent=1 // pred_check_branch
      %96 = sbr.rel (0) target = $region61
    $region60: #{bilstm_crf_forward.1} parent=1 // pred_region
      %97 = dma.done [#allocation9], 128
    $region61: #{bilstm_crf_forward.1} parent=1 // pred_fallthru
      _
    %v98 = vld [vmem:[%s0] sm:$0xff]
    %v99 = vlaneseq
    %v100 = vand.u32 %v99, 127
    %101 = vset.pattern.permute.xlu0 0
    %102 = vperm.xlu0 %101, %v98
    %v103 = vpop.permute.xlu0 %102
    %vm104 = vcmp.eq.s32.totalorder %v100, %v103
    %v105 = vsel %vm104, 1, 0
    %v106 = vcvt.s32.f32 %v105
    %v107 = vld [vmem:[%s1] sm:$0xff]
    %v108 = vld [vmem:[%s1 + $0x8] sm:$0xff]
    %v109 = vld [vmem:[%s1 + $0x10] sm:$0xff]
    %v110 = vld [vmem:[%s2] sm:$0x1]
    %v112 = vlaneseq
    %v113 = vshrl.u32 %v112, 7
    %v114 = vsub.s32 0, %v113
    %v115 = vrot.slane %v110, %v114
    %vm117 = vcmask 195584
    %v119 = vsel %vm117, %v106, 0
    %121 = vmatprep.subr.mxu0 0.0
    %122 = vmatpush1.msra.mxu0 0.0
    %123 = vmatprep.subr.mxu0 0.0
    %124 = vmatpush1.msra.mxu0 0.0
    %125 = vmatprep.subr.mxu0 0.0
    %126 = vmatpush1.msra.mxu0 0.0
    %127 = vmatprep.subr.mxu0 0.0
    %128 = vmatpush1.msra.mxu0 0.0
    %129 = vmatprep.subr.mxu0 0.0
    %130 = vmatpush1.msra.mxu0 0.0
    %131 = vmatprep.subr.mxu0 0.0
    %132 = vmatpush1.msra.mxu0 0.0
    %133 = vmatprep.subr.mxu0 0.0
    %134 = vmatpush1.msra.mxu0 0.0
    %135 = vmatprep.subr.mxu0 0.0
    %136 = vmatpush1.msra.mxu0 0.0
    %137 = vmatprep.subr.mxu0 0.0
    %138 = vmatpush1.msra.mxu0 0.0
    %139 = vmatprep.subr.mxu0 0.0
    %140 = vmatpush1.msra.mxu0 0.0
    %141 = vmatprep.subr.mxu0 0.0
    %142 = vmatpush1.msra.mxu0 0.0
    %143 = vmatprep.subr.mxu0 0.0
    %144 = vmatpush1.msra.mxu0 0.0
    %145 = vmatprep.subr.mxu0 0.0
    %146 = vmatpush1.msra.mxu0 0.0
    %147 = vmatprep.subr.mxu0 0.0
    %148 = vmatpush1.msra.mxu0 %v109
    %149 = vmatprep.subr.mxu0 0.0
    %150 = vmatpush1.msra.mxu0 %v108
    %151 = vmatprep.subr.mxu0 0.0
    %152 = vmatpush1.msra.mxu0 %v107
    %153 = vmatprep.subr.mxu0 0.0
    %154 = vmatpush2.msra.mxu0 0.0
    %155 = vmatprep.subr.mxu0 0.0
    %156 = vmatpush2.msra.mxu0 0.0
    %157 = vmatprep.subr.mxu0 0.0
    %158 = vmatpush2.msra.mxu0 0.0
    %159 = vmatprep.subr.mxu0 0.0
    %160 = vmatpush2.msra.mxu0 0.0
    %161 = vmatprep.subr.mxu0 0.0
    %162 = vmatpush2.msra.mxu0 0.0
    %163 = vmatprep.subr.mxu0 0.0
    %164 = vmatpush2.msra.mxu0 0.0
    %165 = vmatprep.subr.mxu0 0.0
    %166 = vmatpush2.msra.mxu0 0.0
    %167 = vmatprep.subr.mxu0 0.0
    %168 = vmatpush2.msra.mxu0 0.0
    %169 = vmatprep.subr.mxu0 0.0
    %170 = vmatpush2.msra.mxu0 0.0
    %171 = vmatprep.subr.mxu0 0.0
    %172 = vmatpush2.msra.mxu0 0.0
    %173 = vmatprep.subr.mxu0 0.0
    %174 = vmatpush2.msra.mxu0 0.0
    %175 = vmatprep.subr.mxu0 0.0
    %176 = vmatpush2.msra.mxu0 0.0
    %177 = vmatprep.subr.mxu0 0.0
    %178 = vmatpush2.msra.mxu0 0.0
    %179 = vmatprep.subr.mxu0 0.0
    %180 = vmatpush2.msra.mxu0 0.0
    %181 = vmatprep.subr.mxu0 0.0
    %182 = vmatpush2.msra.mxu0 0.0
    %183 = vmatprep.subr.mxu0 0.0
    %184 = vmatpush2.msra.mxu0 0.0
    %185 = vmatprep.mubr.f32.mxu0 0.0
    %186 = vmatmul.mubr.f32.gmra.mxu0 %v119
    %v187 = vpop.f32.mrf.mxu0
    %v188 = vadd.f32 %v115, %v187
    %v189 = vpop.f32.mrf.mxu0
    %190 = vdwg.mxu0
    %vm191 = vcmp.lt.s32.totalorder %v100, 0
    %v192 = vsub.s32 0, %v100
    %v193 = vsel %vm191, %v192, %v100
    %v194 = vshrl.u32 %v193, 5
    %v195 = vand.u32 %v193, 31
    %v196 = vsub.s32 0, %v195
    %v197 = vsel %vm191, %v196, %v195
    %vm198 = vcmp.ne.s32.totalorder %v197, 0
    %vm199 = vcmp.lt.s32.totalorder %v197, 0
    %vm200 = vmand %vm199, %vm198
    %v201 = vadd.s32 %v197, 32
    %v202 = vsel %vm200, %v201, %v197
    %vm203 = vcmp.lt.s32.totalorder %v202, 16
    %v205 = vrot.slane %v188, 7
    %v207 = vsel %vm203, %v188, %v205
    %v208 = vrot.slane %v188, 5
    %v210 = vsel %vm203, %v188, %v208
    %v211 = vrot.slane %v188, 3
    %v213 = vsel %vm203, %v188, %v211
    %v214 = vrot.slane %v188, 1
    %v216 = vsel %vm203, %v188, %v214
    %v217 = vld [vmem:[%s3] sm:$0xff]
    %v218 = vld [vmem:[%s3 + $0x8] sm:$0xff]
    %v219 = vld [vmem:[%s3 + $0x10] sm:$0xff]
    %v220 = vld [vmem:[%s3 + $0x18] sm:$0xff]
    %v221 = vld [vmem:[#allocation2] sm:$0x1]
    %v222 = vld [vmem:[#allocation5] sm:$0x1]
    %vm223 = vcmask 261120
    %v225 = vsel %vm223, %v221, 0
    %227 = vmatprep.subr.mxu0 0.0
    %228 = vmatpush1.msra.mxu0 0.0
    %229 = vmatprep.subr.mxu0 0.0
    %230 = vmatpush1.msra.mxu0 0.0
    %231 = vmatprep.subr.mxu0 0.0
    %232 = vmatpush1.msra.mxu0 0.0
    %233 = vmatprep.subr.mxu0 0.0
    %234 = vmatpush1.msra.mxu0 0.0
    %235 = vmatprep.subr.mxu0 0.0
    %236 = vmatpush1.msra.mxu0 0.0
    %237 = vmatprep.subr.mxu0 0.0
    %238 = vmatpush1.msra.mxu0 0.0
    %239 = vmatprep.subr.mxu0 0.0
    %240 = vmatpush1.msra.mxu0 0.0
    %241 = vmatprep.subr.mxu0 0.0
    %242 = vmatpush1.msra.mxu0 0.0
    %243 = vmatprep.subr.mxu0 0.0
    %244 = vmatpush1.msra.mxu0 0.0
    %245 = vmatprep.subr.mxu0 0.0
    %246 = vmatpush1.msra.mxu0 0.0
    %247 = vmatprep.subr.mxu0 0.0
    %248 = vmatpush1.msra.mxu0 0.0
    %249 = vmatprep.subr.mxu0 0.0
    %250 = vmatpush1.msra.mxu0 0.0
    %251 = vmatprep.subr.mxu0 0.0
    %252 = vmatpush1.msra.mxu0 %v220
    %253 = vmatprep.subr.mxu0 0.0
    %254 = vmatpush1.msra.mxu0 %v219
    %255 = vmatprep.subr.mxu0 0.0
    %256 = vmatpush1.msra.mxu0 %v218
    %257 = vmatprep.subr.mxu0 0.0
    %258 = vmatpush1.msra.mxu0 %v217
    %259 = vmatprep.subr.mxu0 0.0
    %260 = vmatpush2.msra.mxu0 0.0
    %261 = vmatprep.subr.mxu0 0.0
    %262 = vmatpush2.msra.mxu0 0.0
    %263 = vmatprep.subr.mxu0 0.0
    %264 = vmatpush2.msra.mxu0 0.0
    %265 = vmatprep.subr.mxu0 0.0
    %266 = vmatpush2.msra.mxu0 0.0
    %267 = vmatprep.subr.mxu0 0.0
    %268 = vmatpush2.msra.mxu0 0.0
    %269 = vmatprep.subr.mxu0 0.0
    %270 = vmatpush2.msra.mxu0 0.0
    %271 = vmatprep.subr.mxu0 0.0
    %272 = vmatpush2.msra.mxu0 0.0
    %273 = vmatprep.subr.mxu0 0.0
    %274 = vmatpush2.msra.mxu0 0.0
    %275 = vmatprep.subr.mxu0 0.0
    %276 = vmatpush2.msra.mxu0 0.0
    %277 = vmatprep.subr.mxu0 0.0
    %278 = vmatpush2.msra.mxu0 0.0
    %279 = vmatprep.subr.mxu0 0.0
    %280 = vmatpush2.msra.mxu0 0.0
    %281 = vmatprep.subr.mxu0 0.0
    %282 = vmatpush2.msra.mxu0 0.0
    %283 = vmatprep.subr.mxu0 0.0
    %284 = vmatpush2.msra.mxu0 0.0
    %285 = vmatprep.subr.mxu0 0.0
    %286 = vmatpush2.msra.mxu0 0.0
    %287 = vmatprep.subr.mxu0 0.0
    %288 = vmatpush2.msra.mxu0 0.0
    %289 = vmatprep.subr.mxu0 0.0
    %290 = vmatpush2.msra.mxu0 0.0
    %291 = vmatprep.mubr.f32.mxu0 0.0
    %292 = vmatmul.mubr.f32.gmra.mxu0 %v225
    %v293 = vpop.f32.mrf.mxu0
    %v294 = vadd.f32 0.0, %v293
    %v295 = vpop.f32.mrf.mxu0
    %296 = vdwg.mxu0
    %v297 = vadd.f32 %v207, %v294
    %v298 = vxor.u32 %v297, 2147483648
    %v299 = vmul.f32 %v298, 1.442695
    %v300 = vpow.pop %v299
    %v301 = vadd.f32 %v300, 1.0
    %v302 = vrcp.pop %v301
    %v303 = vmul.f32 1.0, %v302
    %v304 = vtanh.pop %v297
    %v306 = vlaneseq
    %v307 = vshrl.u32 %v306, 7
    %v308 = vsub.s32 0, %v307
    %v309 = vrot.slane %v222, %v308
    %310 = vrot.lane.b32.xlu0 %v309, 32
    %v311 = vpop.permute.xlu0 %310
    %v313 = vmul.f32 %v303, %v311
    %315 = vrot.lane.b32.xlu0 %v304, 32
    %v316 = vpop.permute.xlu0 %315
    %v318 = vmul.f32 %v303, %v316
    %320 = vrot.lane.b32.xlu0 %v318, 32
    %v321 = vpop.permute.xlu0 %320
    %v323 = vadd.f32 %v313, %v321
    %v324 = vtanh.pop %v323
    %326 = vrot.lane.b32.xlu0 %v324, 32
    %v327 = vpop.permute.xlu0 %326
    %v329 = vmul.f32 %v303, %v327
    %331 = vrot.lane.b32.xlu0 %v329, 64
    %v332 = vpop.permute.xlu0 %331
    %v333 = vsel %vm223, %v332, 0
    %335 = vmatprep.subr.mxu0 0.0
    %336 = vmatpush1.msra.mxu0 0.0
    %337 = vmatprep.subr.mxu0 0.0
    %338 = vmatpush1.msra.mxu0 0.0
    %339 = vmatprep.subr.mxu0 0.0
    %340 = vmatpush1.msra.mxu0 0.0
    %341 = vmatprep.subr.mxu0 0.0
    %342 = vmatpush1.msra.mxu0 0.0
    %343 = vmatprep.subr.mxu0 0.0
    %344 = vmatpush1.msra.mxu0 0.0
    %345 = vmatprep.subr.mxu0 0.0
    %346 = vmatpush1.msra.mxu0 0.0
    %347 = vmatprep.subr.mxu0 0.0
    %348 = vmatpush1.msra.mxu0 0.0
    %349 = vmatprep.subr.mxu0 0.0
    %350 = vmatpush1.msra.mxu0 0.0
    %351 = vmatprep.subr.mxu0 0.0
    %352 = vmatpush1.msra.mxu0 0.0
    %353 = vmatprep.subr.mxu0 0.0
    %354 = vmatpush1.msra.mxu0 0.0
    %355 = vmatprep.subr.mxu0 0.0
    %356 = vmatpush1.msra.mxu0 0.0
    %357 = vmatprep.subr.mxu0 0.0
    %358 = vmatpush1.msra.mxu0 0.0
    %359 = vmatprep.subr.mxu0 0.0
    %360 = vmatpush1.msra.mxu0 %v220
    %361 = vmatprep.subr.mxu0 0.0
    %362 = vmatpush1.msra.mxu0 %v219
    %363 = vmatprep.subr.mxu0 0.0
    %364 = vmatpush1.msra.mxu0 %v218
    %365 = vmatprep.subr.mxu0 0.0
    %366 = vmatpush1.msra.mxu0 %v217
    %367 = vmatprep.subr.mxu0 0.0
    %368 = vmatpush2.msra.mxu0 0.0
    %369 = vmatprep.subr.mxu0 0.0
    %370 = vmatpush2.msra.mxu0 0.0
    %371 = vmatprep.subr.mxu0 0.0
    %372 = vmatpush2.msra.mxu0 0.0
    %373 = vmatprep.subr.mxu0 0.0
    %374 = vmatpush2.msra.mxu0 0.0
    %375 = vmatprep.subr.mxu0 0.0
    %376 = vmatpush2.msra.mxu0 0.0
    %377 = vmatprep.subr.mxu0 0.0
    %378 = vmatpush2.msra.mxu0 0.0
    %379 = vmatprep.subr.mxu0 0.0
    %380 = vmatpush2.msra.mxu0 0.0
    %381 = vmatprep.subr.mxu0 0.0
    %382 = vmatpush2.msra.mxu0 0.0
    %383 = vmatprep.subr.mxu0 0.0
    %384 = vmatpush2.msra.mxu0 0.0
    %385 = vmatprep.subr.mxu0 0.0
    %386 = vmatpush2.msra.mxu0 0.0
    %387 = vmatprep.subr.mxu0 0.0
    %388 = vmatpush2.msra.mxu0 0.0
    %389 = vmatprep.subr.mxu0 0.0
    %390 = vmatpush2.msra.mxu0 0.0
    %391 = vmatprep.subr.mxu0 0.0
    %392 = vmatpush2.msra.mxu0 0.0
    %393 = vmatprep.subr.mxu0 0.0
    %394 = vmatpush2.msra.mxu0 0.0
    %395 = vmatprep.subr.mxu0 0.0
    %396 = vmatpush2.msra.mxu0 0.0
    %397 = vmatprep.subr.mxu0 0.0
    %398 = vmatpush2.msra.mxu0 0.0
    %399 = vmatprep.mubr.f32.mxu0 0.0
    %400 = vmatmul.mubr.f32.gmra.mxu0 %v333
    %v401 = vpop.f32.mrf.mxu0
    %v402 = vadd.f32 0.0, %v401
    %v403 = vpop.f32.mrf.mxu0
    %404 = vdwg.mxu0
    %v406 = vrot.slane %v402, 7
    %v408 = vadd.f32 %v210, %v406
    %v409 = vxor.u32 %v408, 2147483648
    %v410 = vmul.f32 %v409, 1.442695
    %v411 = vpow.pop %v410
    %v412 = vadd.f32 %v411, 1.0
    %v413 = vrcp.pop %v412
    %v414 = vmul.f32 1.0, %v413
    %v415 = vtanh.pop %v408
    %v417 = vrot.slane %v323, 7
    %v419 = vmul.f32 %v414, %v417
    %421 = vrot.lane.b32.xlu0 %v415, 32
    %v422 = vpop.permute.xlu0 %421
    %v424 = vmul.f32 %v414, %v422
    %426 = vrot.lane.b32.xlu0 %v424, 32
    %v427 = vpop.permute.xlu0 %426
    %v429 = vadd.f32 %v419, %v427
    %v430 = vtanh.pop %v429
    %432 = vrot.lane.b32.xlu0 %v430, 32
    %v433 = vpop.permute.xlu0 %432
    %v435 = vmul.f32 %v414, %v433
    %v437 = vrot.slane %v435, 1
    %438 = vrot.lane.b32.xlu0 %v437, 64
    %v439 = vpop.permute.xlu0 %438
    %v440 = vsel %vm223, %v439, 0
    %442 = vmatprep.subr.mxu0 0.0
    %443 = vmatpush1.msra.mxu0 0.0
    %444 = vmatprep.subr.mxu0 0.0
    %445 = vmatpush1.msra.mxu0 0.0
    %446 = vmatprep.subr.mxu0 0.0
    %447 = vmatpush1.msra.mxu0 0.0
    %448 = vmatprep.subr.mxu0 0.0
    %449 = vmatpush1.msra.mxu0 0.0
    %450 = vmatprep.subr.mxu0 0.0
    %451 = vmatpush1.msra.mxu0 0.0
    %452 = vmatprep.subr.mxu0 0.0
    %453 = vmatpush1.msra.mxu0 0.0
    %454 = vmatprep.subr.mxu0 0.0
    %455 = vmatpush1.msra.mxu0 0.0
    %456 = vmatprep.subr.mxu0 0.0
    %457 = vmatpush1.msra.mxu0 0.0
    %458 = vmatprep.subr.mxu0 0.0
    %459 = vmatpush1.msra.mxu0 0.0
    %460 = vmatprep.subr.mxu0 0.0
    %461 = vmatpush1.msra.mxu0 0.0
    %462 = vmatprep.subr.mxu0 0.0
    %463 = vmatpush1.msra.mxu0 0.0
    %464 = vmatprep.subr.mxu0 0.0
    %465 = vmatpush1.msra.mxu0 0.0
    %466 = vmatprep.subr.mxu0 0.0
    %467 = vmatpush1.msra.mxu0 %v220
    %468 = vmatprep.subr.mxu0 0.0
    %469 = vmatpush1.msra.mxu0 %v219
    %470 = vmatprep.subr.mxu0 0.0
    %471 = vmatpush1.msra.mxu0 %v218
    %472 = vmatprep.subr.mxu0 0.0
    %473 = vmatpush1.msra.mxu0 %v217
    %474 = vmatprep.subr.mxu0 0.0
    %475 = vmatpush2.msra.mxu0 0.0
    %476 = vmatprep.subr.mxu0 0.0
    %477 = vmatpush2.msra.mxu0 0.0
    %478 = vmatprep.subr.mxu0 0.0
    %479 = vmatpush2.msra.mxu0 0.0
    %480 = vmatprep.subr.mxu0 0.0
    %481 = vmatpush2.msra.mxu0 0.0
    %482 = vmatprep.subr.mxu0 0.0
    %483 = vmatpush2.msra.mxu0 0.0
    %484 = vmatprep.subr.mxu0 0.0
    %485 = vmatpush2.msra.mxu0 0.0
    %486 = vmatprep.subr.mxu0 0.0
    %487 = vmatpush2.msra.mxu0 0.0
    %488 = vmatprep.subr.mxu0 0.0
    %489 = vmatpush2.msra.mxu0 0.0
    %490 = vmatprep.subr.mxu0 0.0
    %491 = vmatpush2.msra.mxu0 0.0
    %492 = vmatprep.subr.mxu0 0.0
    %493 = vmatpush2.msra.mxu0 0.0
    %494 = vmatprep.subr.mxu0 0.0
    %495 = vmatpush2.msra.mxu0 0.0
    %496 = vmatprep.subr.mxu0 0.0
    %497 = vmatpush2.msra.mxu0 0.0
    %498 = vmatprep.subr.mxu0 0.0
    %499 = vmatpush2.msra.mxu0 0.0
    %500 = vmatprep.subr.mxu0 0.0
    %501 = vmatpush2.msra.mxu0 0.0
    %502 = vmatprep.subr.mxu0 0.0
    %503 = vmatpush2.msra.mxu0 0.0
    %504 = vmatprep.subr.mxu0 0.0
    %505 = vmatpush2.msra.mxu0 0.0
    %506 = vmatprep.mubr.f32.mxu0 0.0
    %507 = vmatmul.mubr.f32.gmra.mxu0 %v440
    %v508 = vpop.f32.mrf.mxu0
    %v509 = vadd.f32 0.0, %v508
    %v510 = vpop.f32.mrf.mxu0
    %511 = vdwg.mxu0
    %v513 = vrot.slane %v509, 6
    %v515 = vadd.f32 %v213, %v513
    %v516 = vxor.u32 %v515, 2147483648
    %v517 = vmul.f32 %v516, 1.442695
    %v518 = vpow.pop %v517
    %v519 = vadd.f32 %v518, 1.0
    %v520 = vrcp.pop %v519
    %v521 = vmul.f32 1.0, %v520
    %v522 = vtanh.pop %v515
    %v524 = vrot.slane %v429, 7
    %v526 = vmul.f32 %v521, %v524
    %528 = vrot.lane.b32.xlu0 %v522, 32
    %v529 = vpop.permute.xlu0 %528
    %v531 = vmul.f32 %v521, %v529
    %533 = vrot.lane.b32.xlu0 %v531, 32
    %v534 = vpop.permute.xlu0 %533
    %v536 = vadd.f32 %v526, %v534
    %v537 = vtanh.pop %v536
    %539 = vrot.lane.b32.xlu0 %v537, 32
    %v540 = vpop.permute.xlu0 %539
    %v542 = vmul.f32 %v521, %v540
    %v544 = vrot.slane %v542, 2
    %545 = vrot.lane.b32.xlu0 %v544, 64
    %v546 = vpop.permute.xlu0 %545
    %v547 = vsel %vm223, %v546, 0
    %549 = vmatprep.subr.mxu0 0.0
    %550 = vmatpush1.msra.mxu0 0.0
    %551 = vmatprep.subr.mxu0 0.0
    %552 = vmatpush1.msra.mxu0 0.0
    %553 = vmatprep.subr.mxu0 0.0
    %554 = vmatpush1.msra.mxu0 0.0
    %555 = vmatprep.subr.mxu0 0.0
    %556 = vmatpush1.msra.mxu0 0.0
    %557 = vmatprep.subr.mxu0 0.0
    %558 = vmatpush1.msra.mxu0 0.0
    %559 = vmatprep.subr.mxu0 0.0
    %560 = vmatpush1.msra.mxu0 0.0
    %561 = vmatprep.subr.mxu0 0.0
    %562 = vmatpush1.msra.mxu0 0.0
    %563 = vmatprep.subr.mxu0 0.0
    %564 = vmatpush1.msra.mxu0 0.0
    %565 = vmatprep.subr.mxu0 0.0
    %566 = vmatpush1.msra.mxu0 0.0
    %567 = vmatprep.subr.mxu0 0.0
    %568 = vmatpush1.msra.mxu0 0.0
    %569 = vmatprep.subr.mxu0 0.0
    %570 = vmatpush1.msra.mxu0 0.0
    %571 = vmatprep.subr.mxu0 0.0
    %572 = vmatpush1.msra.mxu0 0.0
    %573 = vmatprep.subr.mxu0 0.0
    %574 = vmatpush1.msra.mxu0 %v220
    %575 = vmatprep.subr.mxu0 0.0
    %576 = vmatpush1.msra.mxu0 %v219
    %577 = vmatprep.subr.mxu0 0.0
    %578 = vmatpush1.msra.mxu0 %v218
    %579 = vmatprep.subr.mxu0 0.0
    %580 = vmatpush1.msra.mxu0 %v217
    %581 = vmatprep.subr.mxu0 0.0
    %582 = vmatpush2.msra.mxu0 0.0
    %583 = vmatprep.subr.mxu0 0.0
    %584 = vmatpush2.msra.mxu0 0.0
    %585 = vmatprep.subr.mxu0 0.0
    %586 = vmatpush2.msra.mxu0 0.0
    %587 = vmatprep.subr.mxu0 0.0
    %588 = vmatpush2.msra.mxu0 0.0
    %589 = vmatprep.subr.mxu0 0.0
    %590 = vmatpush2.msra.mxu0 0.0
    %591 = vmatprep.subr.mxu0 0.0
    %592 = vmatpush2.msra.mxu0 0.0
    %593 = vmatprep.subr.mxu0 0.0
    %594 = vmatpush2.msra.mxu0 0.0
    %595 = vmatprep.subr.mxu0 0.0
    %596 = vmatpush2.msra.mxu0 0.0
    %597 = vmatprep.subr.mxu0 0.0
    %598 = vmatpush2.msra.mxu0 0.0
    %599 = vmatprep.subr.mxu0 0.0
    %600 = vmatpush2.msra.mxu0 0.0
    %601 = vmatprep.subr.mxu0 0.0
    %602 = vmatpush2.msra.mxu0 0.0
    %603 = vmatprep.subr.mxu0 0.0
    %604 = vmatpush2.msra.mxu0 0.0
    %605 = vmatprep.subr.mxu0 0.0
    %606 = vmatpush2.msra.mxu0 0.0
    %607 = vmatprep.subr.mxu0 0.0
    %608 = vmatpush2.msra.mxu0 0.0
    %609 = vmatprep.subr.mxu0 0.0
    %610 = vmatpush2.msra.mxu0 0.0
    %611 = vmatprep.subr.mxu0 0.0
    %612 = vmatpush2.msra.mxu0 0.0
    %613 = vmatprep.mubr.f32.mxu0 0.0
    %614 = vmatmul.mubr.f32.gmra.mxu0 %v547
    %v615 = vpop.f32.mrf.mxu0
    %v616 = vadd.f32 0.0, %v615
    %v617 = vpop.f32.mrf.mxu0
    %618 = vdwg.mxu0
    %v620 = vrot.slane %v616, 5
    %v622 = vadd.f32 %v216, %v620
    %v623 = vxor.u32 %v622, 2147483648
    %v624 = vmul.f32 %v623, 1.442695
    %v625 = vpow.pop %v624
    %v626 = vadd.f32 %v625, 1.0
    %v627 = vrcp.pop %v626
    %v628 = vmul.f32 1.0, %v627
    %v629 = vtanh.pop %v622
    %v631 = vrot.slane %v536, 7
    %v633 = vmul.f32 %v628, %v631
    %635 = vrot.lane.b32.xlu0 %v629, 32
    %v636 = vpop.permute.xlu0 %635
    %v638 = vmul.f32 %v628, %v636
    %640 = vrot.lane.b32.xlu0 %v638, 32
    %v641 = vpop.permute.xlu0 %640
    %v643 = vadd.f32 %v633, %v641
    %v644 = vtanh.pop %v643
    %646 = vrot.lane.b32.xlu0 %v644, 32
    %v647 = vpop.permute.xlu0 %646
    %v649 = vmul.f32 %v628, %v647
    %v651 = vrot.slane %v649, 3
    %652 = vrot.lane.b32.xlu0 %v651, 64
    %v653 = vpop.permute.xlu0 %652
    %v654 = vsel %vm223, %v653, 0
    %656 = vmatprep.subr.mxu0 0.0
    %657 = vmatpush1.msra.mxu0 0.0
    %658 = vmatprep.subr.mxu0 0.0
    %659 = vmatpush1.msra.mxu0 0.0
    %660 = vmatprep.subr.mxu0 0.0
    %661 = vmatpush1.msra.mxu0 0.0
    %662 = vmatprep.subr.mxu0 0.0
    %663 = vmatpush1.msra.mxu0 0.0
    %664 = vmatprep.subr.mxu0 0.0
    %665 = vmatpush1.msra.mxu0 0.0
    %666 = vmatprep.subr.mxu0 0.0
    %667 = vmatpush1.msra.mxu0 0.0
    %668 = vmatprep.subr.mxu0 0.0
    %669 = vmatpush1.msra.mxu0 0.0
    %670 = vmatprep.subr.mxu0 0.0
    %671 = vmatpush1.msra.mxu0 0.0
    %672 = vmatprep.subr.mxu0 0.0
    %673 = vmatpush1.msra.mxu0 0.0
    %674 = vmatprep.subr.mxu0 0.0
    %675 = vmatpush1.msra.mxu0 0.0
    %676 = vmatprep.subr.mxu0 0.0
    %677 = vmatpush1.msra.mxu0 0.0
    %678 = vmatprep.subr.mxu0 0.0
    %679 = vmatpush1.msra.mxu0 0.0
    %680 = vmatprep.subr.mxu0 0.0
    %681 = vmatpush1.msra.mxu0 %v220
    %682 = vmatprep.subr.mxu0 0.0
    %683 = vmatpush1.msra.mxu0 %v219
    %684 = vmatprep.subr.mxu0 0.0
    %685 = vmatpush1.msra.mxu0 %v218
    %686 = vmatprep.subr.mxu0 0.0
    %687 = vmatpush1.msra.mxu0 %v217
    %688 = vmatprep.subr.mxu0 0.0
    %689 = vmatpush2.msra.mxu0 0.0
    %690 = vmatprep.subr.mxu0 0.0
    %691 = vmatpush2.msra.mxu0 0.0
    %692 = vmatprep.subr.mxu0 0.0
    %693 = vmatpush2.msra.mxu0 0.0
    %694 = vmatprep.subr.mxu0 0.0
    %695 = vmatpush2.msra.mxu0 0.0
    %696 = vmatprep.subr.mxu0 0.0
    %697 = vmatpush2.msra.mxu0 0.0
    %698 = vmatprep.subr.mxu0 0.0
    %699 = vmatpush2.msra.mxu0 0.0
    %700 = vmatprep.subr.mxu0 0.0
    %701 = vmatpush2.msra.mxu0 0.0
    %702 = vmatprep.subr.mxu0 0.0
    %703 = vmatpush2.msra.mxu0 0.0
    %704 = vmatprep.subr.mxu0 0.0
    %705 = vmatpush2.msra.mxu0 0.0
    %706 = vmatprep.subr.mxu0 0.0
    %707 = vmatpush2.msra.mxu0 0.0
    %708 = vmatprep.subr.mxu0 0.0
    %709 = vmatpush2.msra.mxu0 0.0
    %710 = vmatprep.subr.mxu0 0.0
    %711 = vmatpush2.msra.mxu0 0.0
    %712 = vmatprep.subr.mxu0 0.0
    %713 = vmatpush2.msra.mxu0 0.0
    %714 = vmatprep.subr.mxu0 0.0
    %715 = vmatpush2.msra.mxu0 0.0
    %716 = vmatprep.subr.mxu0 0.0
    %717 = vmatpush2.msra.mxu0 0.0
    %718 = vmatprep.subr.mxu0 0.0
    %719 = vmatpush2.msra.mxu0 0.0
    %720 = vmatprep.mubr.f32.mxu0 0.0
    %721 = vmatmul.mubr.f32.gmra.mxu0 %v654
    %v722 = vpop.f32.mrf.mxu0
    %v723 = vadd.f32 0.0, %v722
    %v724 = vpop.f32.mrf.mxu0
    %725 = vdwg.mxu0
    %v727 = vrot.slane %v723, 4
    %v729 = vadd.f32 %v207, %v727
    %v730 = vxor.u32 %v729, 2147483648
    %v731 = vmul.f32 %v730, 1.442695
    %v732 = vpow.pop %v731
    %v733 = vadd.f32 %v732, 1.0
    %v734 = vrcp.pop %v733
    %v735 = vmul.f32 1.0, %v734
    %v736 = vtanh.pop %v729
    %v738 = vrot.slane %v643, 7
    %v740 = vmul.f32 %v735, %v738
    %742 = vrot.lane.b32.xlu0 %v736, 32
    %v743 = vpop.permute.xlu0 %742
    %v745 = vmul.f32 %v735, %v743
    %747 = vrot.lane.b32.xlu0 %v745, 32
    %v748 = vpop.permute.xlu0 %747
    %v750 = vadd.f32 %v740, %v748
    %v751 = vtanh.pop %v750
    %753 = vrot.lane.b32.xlu0 %v751, 32
    %v754 = vpop.permute.xlu0 %753
    %v756 = vmul.f32 %v735, %v754
    %v758 = vrot.slane %v756, 4
    %759 = vrot.lane.b32.xlu0 %v758, 64
    %v760 = vpop.permute.xlu0 %759
    %v761 = vsel %vm223, %v760, 0
    %763 = vmatprep.subr.mxu0 0.0
    %764 = vmatpush1.msra.mxu0 0.0
    %765 = vmatprep.subr.mxu0 0.0
    %766 = vmatpush1.msra.mxu0 0.0
    %767 = vmatprep.subr.mxu0 0.0
    %768 = vmatpush1.msra.mxu0 0.0
    %769 = vmatprep.subr.mxu0 0.0
    %770 = vmatpush1.msra.mxu0 0.0
    %771 = vmatprep.subr.mxu0 0.0
    %772 = vmatpush1.msra.mxu0 0.0
    %773 = vmatprep.subr.mxu0 0.0
    %774 = vmatpush1.msra.mxu0 0.0
    %775 = vmatprep.subr.mxu0 0.0
    %776 = vmatpush1.msra.mxu0 0.0
    %777 = vmatprep.subr.mxu0 0.0
    %778 = vmatpush1.msra.mxu0 0.0
    %779 = vmatprep.subr.mxu0 0.0
    %780 = vmatpush1.msra.mxu0 0.0
    %781 = vmatprep.subr.mxu0 0.0
    %782 = vmatpush1.msra.mxu0 0.0
    %783 = vmatprep.subr.mxu0 0.0
    %784 = vmatpush1.msra.mxu0 0.0
    %785 = vmatprep.subr.mxu0 0.0
    %786 = vmatpush1.msra.mxu0 0.0
    %787 = vmatprep.subr.mxu0 0.0
    %788 = vmatpush1.msra.mxu0 %v220
    %789 = vmatprep.subr.mxu0 0.0
    %790 = vmatpush1.msra.mxu0 %v219
    %791 = vmatprep.subr.mxu0 0.0
    %792 = vmatpush1.msra.mxu0 %v218
    %793 = vmatprep.subr.mxu0 0.0
    %794 = vmatpush1.msra.mxu0 %v217
    %795 = vmatprep.subr.mxu0 0.0
    %796 = vmatpush2.msra.mxu0 0.0
    %797 = vmatprep.subr.mxu0 0.0
    %798 = vmatpush2.msra.mxu0 0.0
    %799 = vmatprep.subr.mxu0 0.0
    %800 = vmatpush2.msra.mxu0 0.0
    %801 = vmatprep.subr.mxu0 0.0
    %802 = vmatpush2.msra.mxu0 0.0
    %803 = vmatprep.subr.mxu0 0.0
    %804 = vmatpush2.msra.mxu0 0.0
    %805 = vmatprep.subr.mxu0 0.0
    %806 = vmatpush2.msra.mxu0 0.0
    %807 = vmatprep.subr.mxu0 0.0
    %808 = vmatpush2.msra.mxu0 0.0
    %809 = vmatprep.subr.mxu0 0.0
    %810 = vmatpush2.msra.mxu0 0.0
    %811 = vmatprep.subr.mxu0 0.0
    %812 = vmatpush2.msra.mxu0 0.0
    %813 = vmatprep.subr.mxu0 0.0
    %814 = vmatpush2.msra.mxu0 0.0
    %815 = vmatprep.subr.mxu0 0.0
    %816 = vmatpush2.msra.mxu0 0.0
    %817 = vmatprep.subr.mxu0 0.0
    %818 = vmatpush2.msra.mxu0 0.0
    %819 = vmatprep.subr.mxu0 0.0
    %820 = vmatpush2.msra.mxu0 0.0
    %821 = vmatprep.subr.mxu0 0.0
    %822 = vmatpush2.msra.mxu0 0.0
    %823 = vmatprep.subr.mxu0 0.0
    %824 = vmatpush2.msra.mxu0 0.0
    %825 = vmatprep.subr.mxu0 0.0
    %826 = vmatpush2.msra.mxu0 0.0
    %827 = vmatprep.mubr.f32.mxu0 0.0
    %828 = vmatmul.mubr.f32.gmra.mxu0 %v761
    %v829 = vpop.f32.mrf.mxu0
    %v830 = vadd.f32 0.0, %v829
    %v831 = vpop.f32.mrf.mxu0
    %832 = vdwg.mxu0
    %v834 = vrot.slane %v830, 3
    %v836 = vadd.f32 %v210, %v834
    %v837 = vxor.u32 %v836, 2147483648
    %v838 = vmul.f32 %v837, 1.442695
    %v839 = vpow.pop %v838
    %v840 = vadd.f32 %v839, 1.0
    %v841 = vrcp.pop %v840
    %v842 = vmul.f32 1.0, %v841
    %v843 = vtanh.pop %v836
    %v845 = vrot.slane %v750, 7
    %v847 = vmul.f32 %v842, %v845
    %849 = vrot.lane.b32.xlu0 %v843, 32
    %v850 = vpop.permute.xlu0 %849
    %v852 = vmul.f32 %v842, %v850
    %854 = vrot.lane.b32.xlu0 %v852, 32
    %v855 = vpop.permute.xlu0 %854
    %v857 = vadd.f32 %v847, %v855
    %v858 = vtanh.pop %v857
    %860 = vrot.lane.b32.xlu0 %v858, 32
    %v861 = vpop.permute.xlu0 %860
    %v863 = vmul.f32 %v842, %v861
    %v865 = vrot.slane %v863, 5
    %866 = vrot.lane.b32.xlu0 %v865, 64
    %v867 = vpop.permute.xlu0 %866
    %v868 = vsel %vm223, %v867, 0
    %870 = vmatprep.subr.mxu0 0.0
    %871 = vmatpush1.msra.mxu0 0.0
    %872 = vmatprep.subr.mxu0 0.0
    %873 = vmatpush1.msra.mxu0 0.0
    %874 = vmatprep.subr.mxu0 0.0
    %875 = vmatpush1.msra.mxu0 0.0
    %876 = vmatprep.subr.mxu0 0.0
    %877 = vmatpush1.msra.mxu0 0.0
    %878 = vmatprep.subr.mxu0 0.0
    %879 = vmatpush1.msra.mxu0 0.0
    %880 = vmatprep.subr.mxu0 0.0
    %881 = vmatpush1.msra.mxu0 0.0
    %882 = vmatprep.subr.mxu0 0.0
    %883 = vmatpush1.msra.mxu0 0.0
    %884 = vmatprep.subr.mxu0 0.0
    %885 = vmatpush1.msra.mxu0 0.0
    %886 = vmatprep.subr.mxu0 0.0
    %887 = vmatpush1.msra.mxu0 0.0
    %888 = vmatprep.subr.mxu0 0.0
    %889 = vmatpush1.msra.mxu0 0.0
    %890 = vmatprep.subr.mxu0 0.0
    %891 = vmatpush1.msra.mxu0 0.0
    %892 = vmatprep.subr.mxu0 0.0
    %893 = vmatpush1.msra.mxu0 0.0
    %894 = vmatprep.subr.mxu0 0.0
    %895 = vmatpush1.msra.mxu0 %v220
    %896 = vmatprep.subr.mxu0 0.0
    %897 = vmatpush1.msra.mxu0 %v219
    %898 = vmatprep.subr.mxu0 0.0
    %899 = vmatpush1.msra.mxu0 %v218
    %900 = vmatprep.subr.mxu0 0.0
    %901 = vmatpush1.msra.mxu0 %v217
    %902 = vmatprep.subr.mxu0 0.0
    %903 = vmatpush2.msra.mxu0 0.0
    %904 = vmatprep.subr.mxu0 0.0
    %905 = vmatpush2.msra.mxu0 0.0
    %906 = vmatprep.subr.mxu0 0.0
    %907 = vmatpush2.msra.mxu0 0.0
    %908 = vmatprep.subr.mxu0 0.0
    %909 = vmatpush2.msra.mxu0 0.0
    %910 = vmatprep.subr.mxu0 0.0
    %911 = vmatpush2.msra.mxu0 0.0
    %912 = vmatprep.subr.mxu0 0.0
    %913 = vmatpush2.msra.mxu0 0.0
    %914 = vmatprep.subr.mxu0 0.0
    %915 = vmatpush2.msra.mxu0 0.0
    %916 = vmatprep.subr.mxu0 0.0
    %917 = vmatpush2.msra.mxu0 0.0
    %918 = vmatprep.subr.mxu0 0.0
    %919 = vmatpush2.msra.mxu0 0.0
    %920 = vmatprep.subr.mxu0 0.0
    %921 = vmatpush2.msra.mxu0 0.0
    %922 = vmatprep.subr.mxu0 0.0
    %923 = vmatpush2.msra.mxu0 0.0
    %924 = vmatprep.subr.mxu0 0.0
    %925 = vmatpush2.msra.mxu0 0.0
    %926 = vmatprep.subr.mxu0 0.0
    %927 = vmatpush2.msra.mxu0 0.0
    %928 = vmatprep.subr.mxu0 0.0
    %929 = vmatpush2.msra.mxu0 0.0
    %930 = vmatprep.subr.mxu0 0.0
    %931 = vmatpush2.msra.mxu0 0.0
    %932 = vmatprep.subr.mxu0 0.0
    %933 = vmatpush2.msra.mxu0 0.0
    %934 = vmatprep.mubr.f32.mxu0 0.0
    %935 = vmatmul.mubr.f32.gmra.mxu0 %v868
    %v936 = vpop.f32.mrf.mxu0
    %v937 = vadd.f32 0.0, %v936
    %v938 = vpop.f32.mrf.mxu0
    %939 = vdwg.mxu0
    %v941 = vrot.slane %v937, 2
    %v943 = vadd.f32 %v213, %v941
    %v944 = vxor.u32 %v943, 2147483648
    %v945 = vmul.f32 %v944, 1.442695
    %v946 = vpow.pop %v945
    %v947 = vadd.f32 %v946, 1.0
    %v948 = vrcp.pop %v947
    %v949 = vmul.f32 1.0, %v948
    %v950 = vtanh.pop %v943
    %v952 = vrot.slane %v857, 7
    %v954 = vmul.f32 %v949, %v952
    %956 = vrot.lane.b32.xlu0 %v950, 32
    %v957 = vpop.permute.xlu0 %956
    %v959 = vmul.f32 %v949, %v957
    %961 = vrot.lane.b32.xlu0 %v959, 32
    %v962 = vpop.permute.xlu0 %961
    %v964 = vadd.f32 %v954, %v962
    %v965 = vtanh.pop %v964
    %967 = vrot.lane.b32.xlu0 %v965, 32
    %v968 = vpop.permute.xlu0 %967
    %v970 = vmul.f32 %v949, %v968
    %v972 = vrot.slane %v970, 6
    %973 = vrot.lane.b32.xlu0 %v972, 64
    %v974 = vpop.permute.xlu0 %973
    %v975 = vsel %vm223, %v974, 0
    %977 = vmatprep.subr.mxu0 0.0
    %978 = vmatpush1.msra.mxu0 0.0
    %979 = vmatprep.subr.mxu0 0.0
    %980 = vmatpush1.msra.mxu0 0.0
    %981 = vmatprep.subr.mxu0 0.0
    %982 = vmatpush1.msra.mxu0 0.0
    %983 = vmatprep.subr.mxu0 0.0
    %984 = vmatpush1.msra.mxu0 0.0
    %985 = vmatprep.subr.mxu0 0.0
    %986 = vmatpush1.msra.mxu0 0.0
    %987 = vmatprep.subr.mxu0 0.0
    %988 = vmatpush1.msra.mxu0 0.0
    %989 = vmatprep.subr.mxu0 0.0
    %990 = vmatpush1.msra.mxu0 0.0
    %991 = vmatprep.subr.mxu0 0.0
    %992 = vmatpush1.msra.mxu0 0.0
    %993 = vmatprep.subr.mxu0 0.0
    %994 = vmatpush1.msra.mxu0 0.0
    %995 = vmatprep.subr.mxu0 0.0
    %996 = vmatpush1.msra.mxu0 0.0
    %997 = vmatprep.subr.mxu0 0.0
    %998 = vmatpush1.msra.mxu0 0.0
    %999 = vmatprep.subr.mxu0 0.0
    %1000 = vmatpush1.msra.mxu0 0.0
    %1001 = vmatprep.subr.mxu0 0.0
    %1002 = vmatpush1.msra.mxu0 %v220
    %1003 = vmatprep.subr.mxu0 0.0
    %1004 = vmatpush1.msra.mxu0 %v219
    %1005 = vmatprep.subr.mxu0 0.0
    %1006 = vmatpush1.msra.mxu0 %v218
    %1007 = vmatprep.subr.mxu0 0.0
    %1008 = vmatpush1.msra.mxu0 %v217
    %1009 = vmatprep.subr.mxu0 0.0
    %1010 = vmatpush2.msra.mxu0 0.0
    %1011 = vmatprep.subr.mxu0 0.0
    %1012 = vmatpush2.msra.mxu0 0.0
    %1013 = vmatprep.subr.mxu0 0.0
    %1014 = vmatpush2.msra.mxu0 0.0
    %1015 = vmatprep.subr.mxu0 0.0
    %1016 = vmatpush2.msra.mxu0 0.0
    %1017 = vmatprep.subr.mxu0 0.0
    %1018 = vmatpush2.msra.mxu0 0.0
    %1019 = vmatprep.subr.mxu0 0.0
    %1020 = vmatpush2.msra.mxu0 0.0
    %1021 = vmatprep.subr.mxu0 0.0
    %1022 = vmatpush2.msra.mxu0 0.0
    %1023 = vmatprep.subr.mxu0 0.0
    %1024 = vmatpush2.msra.mxu0 0.0
    %1025 = vmatprep.subr.mxu0 0.0
    %1026 = vmatpush2.msra.mxu0 0.0
    %1027 = vmatprep.subr.mxu0 0.0
    %1028 = vmatpush2.msra.mxu0 0.0
    %1029 = vmatprep.subr.mxu0 0.0
    %1030 = vmatpush2.msra.mxu0 0.0
    %1031 = vmatprep.subr.mxu0 0.0
    %1032 = vmatpush2.msra.mxu0 0.0
    %1033 = vmatprep.subr.mxu0 0.0
    %1034 = vmatpush2.msra.mxu0 0.0
    %1035 = vmatprep.subr.mxu0 0.0
    %1036 = vmatpush2.msra.mxu0 0.0
    %1037 = vmatprep.subr.mxu0 0.0
    %1038 = vmatpush2.msra.mxu0 0.0
    %1039 = vmatprep.subr.mxu0 0.0
    %1040 = vmatpush2.msra.mxu0 0.0
    %1041 = vmatprep.mubr.f32.mxu0 0.0
    %1042 = vmatmul.mubr.f32.gmra.mxu0 %v975
    %v1043 = vpop.f32.mrf.mxu0
    %v1044 = vadd.f32 0.0, %v1043
    %v1045 = vpop.f32.mrf.mxu0
    %1046 = vdwg.mxu0
    %v1048 = vrot.slane %v1044, 1
    %v1050 = vadd.f32 %v216, %v1048
    %v1051 = vxor.u32 %v1050, 2147483648
    %v1052 = vmul.f32 %v1051, 1.442695
    %v1053 = vpow.pop %v1052
    %v1054 = vadd.f32 %v1053, 1.0
    %v1055 = vrcp.pop %v1054
    %v1056 = vmul.f32 1.0, %v1055
    %v1057 = vtanh.pop %v1050
    %v1059 = vrot.slane %v964, 7
    %v1061 = vmul.f32 %v1056, %v1059
    %1063 = vrot.lane.b32.xlu0 %v1057, 32
    %v1064 = vpop.permute.xlu0 %1063
    %v1066 = vmul.f32 %v1056, %v1064
    %1068 = vrot.lane.b32.xlu0 %v1066, 32
    %v1069 = vpop.permute.xlu0 %1068
    %v1071 = vadd.f32 %v1061, %v1069
    %v1072 = vtanh.pop %v1071
    %1074 = vrot.lane.b32.xlu0 %v1072, 32
    %v1075 = vpop.permute.xlu0 %1074
    %v1077 = vmul.f32 %v1056, %v1075
    %vm1078 = vcmp.lt.s32.totalorder %v100, 16
    %v1081 = vrot.slane %v1077, 7
    %1082 = vrot.lane.b32.xlu0 %v1081, 64
    %v1083 = vpop.permute.xlu0 %1082
    %v1085 = vsel %vm1078, %v332, %v1083
    %v1088 = vsel %vm1078, %v439, %v974
    %v1091 = vsel %vm1078, %v546, %v867
    %v1094 = vsel %vm1078, %v653, %v760
    %v1095 = vsel %vm1078, %v760, %v653
    %v1096 = vsel %vm1078, %v867, %v546
    %v1097 = vsel %vm1078, %v974, %v439
    %v1098 = vsel %vm1078, %v1083, %v332
    %v1100 = vrot.slane %v1088, 7
    %v1103 = vrot.slane %v1091, 6
    %v1106 = vrot.slane %v1094, 5
    %v1109 = vrot.slane %v1095, 4
    %v1112 = vrot.slane %v1096, 3
    %v1115 = vrot.slane %v1097, 2
    %v1118 = vrot.slane %v1098, 1
    %vm1120 = vcmask 1040384
    %v1121 = vsel %vm1120, %v1085, %v1100
    %vm1122 = vcmask 1041408
    %v1123 = vsel %vm1122, %v1121, %v1103
    %vm1124 = vcmask 1042432
    %v1125 = vsel %vm1124, %v1123, %v1106
    %vm1126 = vcmask 1043456
    %v1127 = vsel %vm1126, %v1125, %v1109
    %vm1128 = vcmask 1044480
    %v1129 = vsel %vm1128, %v1127, %v1112
    %vm1130 = vcmask 1045504
    %v1131 = vsel %vm1130, %v1129, %v1115
    %vm1132 = vcmask 1046528
    %v1133 = vsel %vm1132, %v1131, %v1118
    %v1134 = vld [vmem:[%s6] sm:$0xff]
    %v1135 = vld [vmem:[%s6 + $0x8] sm:$0xff]
    %v1136 = vld [vmem:[%s6 + $0x10] sm:$0xff]
    %v1137 = vld [vmem:[%s6 + $0x18] sm:$0xff]
    %v1138 = vld [vmem:[#allocation7] sm:$0x1]
    %v1140 = vlaneseq
    %v1141 = vshrl.u32 %v1140, 7
    %v1142 = vsub.s32 0, %v1141
    %v1143 = vrot.slane %v1138, %v1142
    %v1146 = vsel %vm223, %v1133, 0
    %1148 = vmatprep.subr.mxu0 0.0
    %1149 = vmatpush1.msra.mxu0 0.0
    %1150 = vmatprep.subr.mxu0 0.0
    %1151 = vmatpush1.msra.mxu0 0.0
    %1152 = vmatprep.subr.mxu0 0.0
    %1153 = vmatpush1.msra.mxu0 0.0
    %1154 = vmatprep.subr.mxu0 0.0
    %1155 = vmatpush1.msra.mxu0 0.0
    %1156 = vmatprep.subr.mxu0 0.0
    %1157 = vmatpush1.msra.mxu0 0.0
    %1158 = vmatprep.subr.mxu0 0.0
    %1159 = vmatpush1.msra.mxu0 0.0
    %1160 = vmatprep.subr.mxu0 0.0
    %1161 = vmatpush1.msra.mxu0 0.0
    %1162 = vmatprep.subr.mxu0 0.0
    %1163 = vmatpush1.msra.mxu0 0.0
    %1164 = vmatprep.subr.mxu0 0.0
    %1165 = vmatpush1.msra.mxu0 0.0
    %1166 = vmatprep.subr.mxu0 0.0
    %1167 = vmatpush1.msra.mxu0 0.0
    %1168 = vmatprep.subr.mxu0 0.0
    %1169 = vmatpush1.msra.mxu0 0.0
    %1170 = vmatprep.subr.mxu0 0.0
    %1171 = vmatpush1.msra.mxu0 0.0
    %1172 = vmatprep.subr.mxu0 0.0
    %1173 = vmatpush1.msra.mxu0 %v1137
    %1174 = vmatprep.subr.mxu0 0.0
    %1175 = vmatpush1.msra.mxu0 %v1136
    %1176 = vmatprep.subr.mxu0 0.0
    %1177 = vmatpush1.msra.mxu0 %v1135
    %1178 = vmatprep.subr.mxu0 0.0
    %1179 = vmatpush1.msra.mxu0 %v1134
    %1180 = vmatprep.subr.mxu0 0.0
    %1181 = vmatpush2.msra.mxu0 0.0
    %1182 = vmatprep.subr.mxu0 0.0
    %1183 = vmatpush2.msra.mxu0 0.0
    %1184 = vmatprep.subr.mxu0 0.0
    %1185 = vmatpush2.msra.mxu0 0.0
    %1186 = vmatprep.subr.mxu0 0.0
    %1187 = vmatpush2.msra.mxu0 0.0
    %1188 = vmatprep.subr.mxu0 0.0
    %1189 = vmatpush2.msra.mxu0 0.0
    %1190 = vmatprep.subr.mxu0 0.0
    %1191 = vmatpush2.msra.mxu0 0.0
    %1192 = vmatprep.subr.mxu0 0.0
    %1193 = vmatpush2.msra.mxu0 0.0
    %1194 = vmatprep.subr.mxu0 0.0
    %1195 = vmatpush2.msra.mxu0 0.0
    %1196 = vmatprep.subr.mxu0 0.0
    %1197 = vmatpush2.msra.mxu0 0.0
    %1198 = vmatprep.subr.mxu0 0.0
    %1199 = vmatpush2.msra.mxu0 0.0
    %1200 = vmatprep.subr.mxu0 0.0
    %1201 = vmatpush2.msra.mxu0 0.0
    %1202 = vmatprep.subr.mxu0 0.0
    %1203 = vmatpush2.msra.mxu0 0.0
    %1204 = vmatprep.subr.mxu0 0.0
    %1205 = vmatpush2.msra.mxu0 0.0
    %1206 = vmatprep.subr.mxu0 0.0
    %1207 = vmatpush2.msra.mxu0 0.0
    %1208 = vmatprep.subr.mxu0 0.0
    %1209 = vmatpush2.msra.mxu0 0.0
    %1210 = vmatprep.subr.mxu0 0.0
    %1211 = vmatpush2.msra.mxu0 0.0
    %1212 = vmatprep.mubr.f32.mxu0 0.0
    %1213 = vmatmul.mubr.f32.gmra.mxu0 %v1146
    %v1214 = vpop.f32.mrf.mxu0
    %v1215 = vadd.f32 %v1143, %v1214
    %v1216 = vpop.f32.mrf.mxu0
    %1217 = vdwg.mxu0
    %vm1218 = vcmask 64512
    %1219 = vst.msk [vmem:[#allocation14] sm:$0xff] %vm1218, %v1215
    %v1220 = vld [vmem:[#allocation8] sm:$0xff]
    %v1221 = vld [vmem:[#allocation10] sm:$0xff]
    %v1222 = vcvt.s32.f32 %v100
    %v1223 = vlaneseq
    %v1224 = vshrl.u32 %v1223, 7
    %v1225 = vcvt.s32.f32 %v1224
    %vm1226 = vcmp.eq.s32.totalorder %v1224, %v100
    %v1227 = vsel %vm1226, 1, 0
    %v1228 = vcvt.s32.f32 %v1227
    %vm1229 = vcmp.eq.f32.partialorder %v1222, 3.0
    %vm1230 = vcmp.lt.f32.partialorder %v1222, 5.0
    %v1231 = vsel %vm1230, -10000.0, -1e+09
    %v1232 = vsel %vm1229, 0.0, %v1231
    %v1233 = vlaneseq
    %v1234 = vshrl.u32 %v1233, 7
    %v1235 = vsub.s32 0, %v1234
    %v1236 = vrot.slane %v1215, %v1235
    %v1237 = vmul.f32 %v1236, %v1228
    %v1238 = vsel %vm1218, %v1237, 0.0
    %1239 = vadd.xlane.f32.xlu0 %v1238
    %v1240 = vpop.xlane.xlu0 %1239
    %v1241 = vlaneseq
    %v1242 = vshrl.u32 %v1241, 7
    %v1243 = vsub.s32 2, %v1242
    %v1244 = vrot.slane %v1215, %v1243
    %v1245 = vmul.f32 %v1244, %v1228
    %v1246 = vsel %vm1218, %v1245, 0.0
    %1247 = vadd.xlane.f32.xlu0 %v1246
    %v1248 = vpop.xlane.xlu0 %1247
    %v1249 = vlaneseq
    %v1250 = vshrl.u32 %v1249, 7
    %v1251 = vsub.s32 4, %v1250
    %v1252 = vrot.slane %v1215, %v1251
    %v1253 = vmul.f32 %v1252, %v1228
    %v1254 = vsel %vm1218, %v1253, 0.0
    %1255 = vadd.xlane.f32.xlu0 %v1254
    %v1256 = vpop.xlane.xlu0 %1255
    %v1257 = vlaneseq
    %v1258 = vshrl.u32 %v1257, 7
    %v1259 = vsub.s32 6, %v1258
    %v1260 = vrot.slane %v1215, %v1259
    %v1261 = vmul.f32 %v1260, %v1228
    %v1262 = vsel %vm1218, %v1261, 0.0
    %1263 = vadd.xlane.f32.xlu0 %v1262
    %v1264 = vpop.xlane.xlu0 %1263
    %v1265 = vadd.f32 %v1220, %v1232
    %v1266 = vsel %vm1218, %v1265, -inf
    %1267 = vmax.xlane.f32.xlu0 %v1266
    %v1268 = vpop.xlane.xlu0 %1267
    %v1269 = vadd.f32 %v1268, %v1240
    %v1270 = vadd.f32 %v1221, %v1269
    %v1271 = vsel %vm1218, %v1270, -inf
    %v1272 = vrot.slane %v1271, 4
    %v1273 = vmax.f32 %v1271, %v1272
    %v1274 = vrot.slane %v1273, 2
    %v1275 = vmax.f32 %v1273, %v1274
    %v1276 = vrot.slane %v1275, 1
    %v1277 = vmax.f32 %v1275, %v1276
    %vm1278 = vcmp.ge.f32.partialorder %v1270, %v1277
    %v1279 = vsel %vm1278, %v1225, 8.0
    %v1280 = vsel %vm1218, %v1279, inf
    %v1281 = vrot.slane %v1280, 4
    %v1282 = vmin.f32 %v1280, %v1281
    %v1283 = vrot.slane %v1282, 2
    %v1284 = vmin.f32 %v1282, %v1283
    %v1285 = vrot.slane %v1284, 1
    %v1286 = vmin.f32 %v1284, %v1285
    %v1287 = vadd.f32 %v1277, %v1215
    %v1288 = vlaneseq
    %v1289 = vshrl.u32 %v1288, 7
    %v1290 = vsub.s32 1, %v1289
    %v1291 = vrot.slane %v1287, %v1290
    %v1292 = vadd.f32 %v1220, %v1291
    %v1293 = vsel %vm1218, %v1292, -inf
    %1294 = vmax.xlane.f32.xlu0 %v1293
    %v1295 = vpop.xlane.xlu0 %1294
    %vm1296 = vcmp.ge.f32.partialorder %v1292, %v1295
    %v1297 = vsel %vm1296, %v1222, 8.0
    %v1298 = vsel %vm1218, %v1297, inf
    %1299 = vmin.xlane.f32.xlu0 %v1298
    %v1300 = vpop.xlane.xlu0 %1299
    %v1301 = vadd.f32 %v1295, %v1248
    %v1302 = vadd.f32 %v1221, %v1301
    %v1303 = vsel %vm1218, %v1302, -inf
    %v1304 = vrot.slane %v1303, 4
    %v1305 = vmax.f32 %v1303, %v1304
    %v1306 = vrot.slane %v1305, 2
    %v1307 = vmax.f32 %v1305, %v1306
    %v1308 = vrot.slane %v1307, 1
    %v1309 = vmax.f32 %v1307, %v1308
    %vm1310 = vcmp.ge.f32.partialorder %v1302, %v1309
    %v1311 = vsel %vm1310, %v1225, 8.0
    %v1312 = vsel %vm1218, %v1311, inf
    %v1313 = vrot.slane %v1312, 4
    %v1314 = vmin.f32 %v1312, %v1313
    %v1315 = vrot.slane %v1314, 2
    %v1316 = vmin.f32 %v1314, %v1315
    %v1317 = vrot.slane %v1316, 1
    %v1318 = vmin.f32 %v1316, %v1317
    %v1319 = vadd.f32 %v1309, %v1215
    %v1320 = vlaneseq
    %v1321 = vshrl.u32 %v1320, 7
    %v1322 = vsub.s32 3, %v1321
    %v1323 = vrot.slane %v1319, %v1322
    %v1324 = vadd.f32 %v1220, %v1323
    %v1325 = vsel %vm1218, %v1324, -inf
    %1326 = vmax.xlane.f32.xlu0 %v1325
    %v1327 = vpop.xlane.xlu0 %1326
    %vm1328 = vcmp.ge.f32.partialorder %v1324, %v1327
    %v1329 = vsel %vm1328, %v1222, 8.0
    %v1330 = vsel %vm1218, %v1329, inf
    %1331 = vmin.xlane.f32.xlu0 %v1330
    %v1332 = vpop.xlane.xlu0 %1331
    %v1333 = vadd.f32 %v1327, %v1256
    %v1334 = vadd.f32 %v1221, %v1333
    %v1335 = vsel %vm1218, %v1334, -inf
    %v1336 = vrot.slane %v1335, 4
    %v1337 = vmax.f32 %v1335, %v1336
    %v1338 = vrot.slane %v1337, 2
    %v1339 = vmax.f32 %v1337, %v1338
    %v1340 = vrot.slane %v1339, 1
    %v1341 = vmax.f32 %v1339, %v1340
    %vm1342 = vcmp.ge.f32.partialorder %v1334, %v1341
    %v1343 = vsel %vm1342, %v1225, 8.0
    %v1344 = vsel %vm1218, %v1343, inf
    %v1345 = vrot.slane %v1344, 4
    %v1346 = vmin.f32 %v1344, %v1345
    %v1347 = vrot.slane %v1346, 2
    %v1348 = vmin.f32 %v1346, %v1347
    %v1349 = vrot.slane %v1348, 1
    %v1350 = vmin.f32 %v1348, %v1349
    %v1351 = vadd.f32 %v1341, %v1215
    %v1352 = vlaneseq
    %v1353 = vshrl.u32 %v1352, 7
    %v1354 = vsub.s32 5, %v1353
    %v1355 = vrot.slane %v1351, %v1354
    %v1356 = vadd.f32 %v1220, %v1355
    %v1357 = vsel %vm1218, %v1356, -inf
    %1358 = vmax.xlane.f32.xlu0 %v1357
    %v1359 = vpop.xlane.xlu0 %1358
    %vm1360 = vcmp.ge.f32.partialorder %v1356, %v1359
    %v1361 = vsel %vm1360, %v1222, 8.0
    %v1362 = vsel %vm1218, %v1361, inf
    %1363 = vmin.xlane.f32.xlu0 %v1362
    %v1364 = vpop.xlane.xlu0 %1363
    %v1365 = vadd.f32 %v1359, %v1264
    %v1366 = vadd.f32 %v1221, %v1365
    %v1367 = vsel %vm1218, %v1366, -inf
    %v1368 = vrot.slane %v1367, 4
    %v1369 = vmax.f32 %v1367, %v1368
    %v1370 = vrot.slane %v1369, 2
    %v1371 = vmax.f32 %v1369, %v1370
    %v1372 = vrot.slane %v1371, 1
    %v1373 = vmax.f32 %v1371, %v1372
    %vm1374 = vcmp.ge.f32.partialorder %v1366, %v1373
    %v1375 = vsel %vm1374, %v1225, 8.0
    %v1376 = vsel %vm1218, %v1375, inf
    %v1377 = vrot.slane %v1376, 4
    %v1378 = vmin.f32 %v1376, %v1377
    %v1379 = vrot.slane %v1378, 2
    %v1380 = vmin.f32 %v1378, %v1379
    %v1381 = vrot.slane %v1380, 1
    %v1382 = vmin.f32 %v1380, %v1381
    %v1383 = vadd.f32 %v1373, %v1215
    %v1385 = vrot.slane %v1220, 5
    %v1387 = vadd.f32 %v1383, %v1385
    %vm1388 = vcmask 64519
    %v1389 = vsel %vm1388, %v1387, -inf
    %1390 = vmax.xlane.f32.xlu0 %v1389
    %v1391 = vpop.xlane.xlu0 %1390
    %vm1392 = vcmp.ge.f32.partialorder %v1387, %v1391
    %v1393 = vsel %vm1392, %v1222, 8.0
    %v1394 = vsel %vm1388, %v1393, inf
    %1395 = vmin.xlane.f32.xlu0 %v1394
    %v1396 = vpop.xlane.xlu0 %1395
    %vm1397 = vcmask 7175
    %1398 = vst.msk [vmem:[#allocation11 - $0x7] sm:$0x80] %vm1397, %v1391
    %vm1399 = vcmp.eq.f32.partialorder %v1222, 7.0
    %v1400 = vsel %vm1399, %v1396, 0.0
    %vm1401 = vcmp.eq.f32.partialorder %v1222, %v1396
    %v1402 = vsel %vm1401, %v1382, 0.0
    %v1403 = vsel %vm1388, %v1402, 0.0
    %1404 = vadd.xlane.f32.xlu0 %v1403
    %v1405 = vpop.xlane.xlu0 %1404
    %vm1406 = vcmp.eq.f32.partialorder %v1222, 6.0
    %v1407 = vsel %vm1406, %v1405, %v1400
    %v1408 = vlaneseq
    %v1409 = vshrl.u32 %v1408, 7
    %v1410 = vsub.s32 7, %v1409
    %v1411 = vrot.slane %v1405, %v1410
    %vm1412 = vcmp.eq.f32.partialorder %v1225, %v1411
    %v1413 = vsel %vm1412, %v1364, 0.0
    %v1414 = vrot.slane %v1413, 4
    %v1415 = vadd.f32 %v1413, %v1414
    %v1416 = vrot.slane %v1415, 2
    %v1417 = vadd.f32 %v1415, %v1416
    %v1418 = vrot.slane %v1417, 1
    %v1419 = vadd.f32 %v1417, %v1418
    %vm1420 = vcmp.eq.f32.partialorder %v1222, 5.0
    %v1421 = vsel %vm1420, %v1419, %v1407
    %vm1422 = vcmp.eq.f32.partialorder %v1222, %v1419
    %v1423 = vsel %vm1422, %v1350, 0.0
    %v1424 = vsel %vm1218, %v1423, 0.0
    %1425 = vadd.xlane.f32.xlu0 %v1424
    %v1426 = vpop.xlane.xlu0 %1425
    %vm1427 = vcmp.eq.f32.partialorder %v1222, 4.0
    %v1428 = vsel %vm1427, %v1426, %v1421
    %vm1429 = vcmp.eq.f32.partialorder %v1225, %v1426
    %v1430 = vsel %vm1429, %v1332, 0.0
    %v1431 = vrot.slane %v1430, 4
    %v1432 = vadd.f32 %v1430, %v1431
    %v1433 = vrot.slane %v1432, 2
    %v1434 = vadd.f32 %v1432, %v1433
    %v1435 = vrot.slane %v1434, 1
    %v1436 = vadd.f32 %v1434, %v1435
    %v1437 = vsel %vm1229, %v1436, %v1428
    %vm1438 = vcmp.eq.f32.partialorder %v1222, %v1436
    %v1439 = vsel %vm1438, %v1318, 0.0
    %v1440 = vsel %vm1218, %v1439, 0.0
    %1441 = vadd.xlane.f32.xlu0 %v1440
    %v1442 = vpop.xlane.xlu0 %1441
    %vm1443 = vcmp.eq.f32.partialorder %v1222, 2.0
    %v1444 = vsel %vm1443, %v1442, %v1437
    %vm1445 = vcmp.eq.f32.partialorder %v1225, %v1442
    %v1446 = vsel %vm1445, %v1300, 0.0
    %v1447 = vrot.slane %v1446, 4
    %v1448 = vadd.f32 %v1446, %v1447
    %v1449 = vrot.slane %v1448, 2
    %v1450 = vadd.f32 %v1448, %v1449
    %v1451 = vrot.slane %v1450, 1
    %v1452 = vadd.f32 %v1450, %v1451
    %vm1453 = vcmp.eq.f32.partialorder %v1222, 1.0
    %v1454 = vsel %vm1453, %v1452, %v1444
    %vm1455 = vcmp.eq.f32.partialorder %v1222, %v1452
    %v1456 = vsel %vm1455, %v1286, 0.0
    %v1457 = vsel %vm1218, %v1456, 0.0
    %1458 = vadd.xlane.f32.xlu0 %v1457
    %v1459 = vpop.xlane.xlu0 %1458
    %vm1460 = vcmp.eq.f32.partialorder %v1222, 0.0
    %v1461 = vsel %vm1460, %v1459, %v1454
    %v1462 = vcvt.f32.s32.to.zero.pseudo %v1461
    %1463 = vst.msk [vmem:[#allocation12 - $0x7] sm:$0x80] %vm1388, %v1462
    // Predicated region
    $region62: #{bilstm_crf_forward.1} parent=1 // pred_check
      _
    $region63: #{bilstm_crf_forward.1} parent=1 // pred_check_branch
      %1465 = sbr.rel (0) target = $region65
    $region64: #{bilstm_crf_forward.1} parent=1 // pred_region
      %s1467 = ssub.s32 16, 16
      %1468 = vsyncadd [#allocation4], %s1467
      %s1470 = sshll.u32 [#allocation11], 4
      %s1471 = int_to_ptr.vmem [resolvable:$true] %s1470
      %1473 = dma.vmem_to_hbm [thread:$0]  %s1471, 16, %s10, [#allocation4]
    $region65: #{bilstm_crf_forward.1} parent=1 // pred_fallthru
      _
    // Predicated region
    $region66: #{bilstm_crf_forward.1} parent=1 // pred_check
      _
    $region67: #{bilstm_crf_forward.1} parent=1 // pred_check_branch
      %1475 = sbr.rel (0) target = $region69
    $region68: #{bilstm_crf_forward.1} parent=1 // pred_region
      %s1477 = ssub.s32 16, 16
      %1478 = vsyncadd [#allocation13], %s1477
      %s1480 = sshll.u32 [#allocation12], 4
      %s1481 = int_to_ptr.vmem [resolvable:$true] %s1480
      %1483 = dma.vmem_to_hbm [thread:$0]  %s1481, 16, %s11, [#allocation13]
    $region69: #{bilstm_crf_forward.1} parent=1 // pred_fallthru
      _
    // Predicated region
    $region70: #{bilstm_crf_forward.1} parent=1 // pred_check
      _
    $region71: #{bilstm_crf_forward.1} parent=1 // pred_check_branch
      %1485 = sbr.rel (0) target = $region73
    $region72: #{bilstm_crf_forward.1} parent=1 // pred_region
      %s1487 = ssub.s32 128, 128
      %1488 = vsyncadd [#allocation13], %s1487
      %s1490 = sshll.u32 [#allocation14], 4
      %s1491 = int_to_ptr.vmem [resolvable:$true] %s1490
      %1493 = dma.vmem_to_hbm [thread:$0]  %s1491, 128, %s12, [#allocation13]
    $region73: #{bilstm_crf_forward.1} parent=1 // pred_fallthru
      _
    // Predicated region
    $region74: #{bilstm_crf_forward.1} parent=1 // pred_check
      _
    $region75: #{bilstm_crf_forward.1} parent=1 // pred_check_branch
      %1495 = sbr.rel (0) target = $region77
    $region76: #{bilstm_crf_forward.1} parent=1 // pred_region
      %1496 = dma.done [#allocation4], 16
    $region77: #{bilstm_crf_forward.1} parent=1 // pred_fallthru
      _
    // Predicated region
    $region78: #{bilstm_crf_forward.1} parent=1 // pred_check
      _
    $region79: #{bilstm_crf_forward.1} parent=1 // pred_check_branch
      %1498 = sbr.rel (0) target = $region81
    $region80: #{bilstm_crf_forward.1} parent=1 // pred_region
      %1499 = dma.done [#allocation13], 16
    $region81: #{bilstm_crf_forward.1} parent=1 // pred_fallthru
      _
    // Predicated region
    $region82: #{bilstm_crf_forward.1} parent=1 // pred_check
      _
    $region83: #{bilstm_crf_forward.1} parent=1 // pred_check_branch
      %1501 = sbr.rel (0) target = $region85
    $region84: #{bilstm_crf_forward.1} parent=1 // pred_region
      %1502 = dma.done [#allocation13], 128
    $region85: #{bilstm_crf_forward.1} parent=1 // pred_fallthru
      _
    %1503 = vsyncpa [#allocation3], 1
    %1504 = vsyncpa [#allocation6], 1
    %1505 = vsyncpa [#allocation9], 1
    %1506 = vsyncpa [#allocation4], 1
    %1507 = vsyncpa [#allocation13], 1

</llo_original>
